<compile_context>
chip_gen: v7x
topology: tpu7x:2x2x1
jax: 0.10.0
libtpu: 0.0.40
codegen_flags: <defaults>
</compile_context>

<pallas_src>
import math

import jax
import jax.numpy as jnp
from jax.experimental import pallas as pl
from jax.experimental.pallas import tpu as pltpu

BN_EPS = 1e-5     # torch.nn.BatchNorm1d default eps
L2_EPS = 1e-12    # torch.nn.functional.normalize default eps


# ------------------------------ Pallas kernel ------------------------------ #

def _simconv4_kernel(xs_ref,
                     w1m_ref, w1d_ref, w1u_ref,
                     w2m_ref, w2d_ref, w2u_ref,
                     w3m_ref, w3d_ref, w3u_ref,
                     w4m_ref, w4d_ref, w4u_ref,
                     o_ref):
    # xs_ref : (N, 16) f32  packed input; row b*Ls + j, lane m <-> x[b, 16*j+m]
    # wXm/wXd/wXu : block-structured conv weights (main / down-halo / up-halo)
    # o_ref  : (B, 64) f32  L2-normalized features
    N = xs_ref.shape[0]
    B = o_ref.shape[0]
    feat = o_ref.shape[1]            # 64
    Ls = N // B                      # positions per stream per batch element

    # Halo validity masks for the +/-1 sublane rolls (conv zero padding and
    # batch-block boundaries), built in-kernel and reused by all four layers.
    j = jax.lax.broadcasted_iota(jnp.int32, (N, 1), 0) % Ls
    mdn = j != 0                     # row j-1 exists (else: left zero pad)
    mup = j != (Ls - 1)              # row j+1 exists (else: right zero pad)

    def conv_bn_relu(x, wm_ref, wd_ref, wu_ref, cout):
        wm = wm_ref[...]
        wd = wd_ref[...]
        wu = wu_ref[...]

        # Halo-shifted copies of the whole packed activation (sublane rolls).
        xd = jnp.where(mdn, pltpu.roll(x, shift=1, axis=0), 0.0)      # row j-1
        xu = jnp.where(mup, pltpu.roll(x, shift=N - 1, axis=0), 0.0)  # row j+1

        # Block-structured conv: one main matmul + two halo corrections.
        y = (jnp.dot(x, wm, preferred_element_type=jnp.float32)
             + jnp.dot(xd, wd, preferred_element_type=jnp.float32)
             + jnp.dot(xu, wu, preferred_element_type=jnp.float32))

        # BatchNorm1d, training-mode batch statistics over batch x length
        # (= all rows of all stream groups that share a channel), gamma=1,
        # beta=0, biased variance; then ReLU.
        width = y.shape[1]
        groups = width // cout
        s1 = jnp.sum(y, axis=0, keepdims=True)          # (1, width)
        s2 = jnp.sum(y * y, axis=0, keepdims=True)      # (1, width)
        if groups > 1:
            # Fold the per-group partial sums that belong to the same channel
            # and re-broadcast the channel totals back to every group, in one
            # tiny matmul: fold[a, b] = 1 iff lanes a and b hold the same
            # channel (a % cout == b % cout).
            la = jax.lax.broadcasted_iota(jnp.int32, (width, width), 0) % cout
            lb = jax.lax.broadcasted_iota(jnp.int32, (width, width), 1) % cout
            fold = (la == lb).astype(jnp.float32)
            s1 = jnp.dot(s1, fold, preferred_element_type=jnp.float32)
            s2 = jnp.dot(s2, fold, preferred_element_type=jnp.float32)
        n = float(N * groups)
        mean = s1 / n
        var = jnp.maximum(s2 / n - mean * mean, 0.0)     # guard cancellation
        scale = jax.lax.rsqrt(var + BN_EPS)
        return jnp.maximum((y - mean) * scale, 0.0)

    # Four fused conv -> BN -> ReLU layers; activations stay (N, 64) packed.
    h = conv_bn_relu(xs_ref[...], w1m_ref, w1d_ref, w1u_ref, 8)
    h = conv_bn_relu(h, w2m_ref, w2d_ref, w2u_ref, 16)
    h = conv_bn_relu(h, w3m_ref, w3d_ref, w3u_ref, 32)
    h = conv_bn_relu(h, w4m_ref, w4d_ref, w4u_ref, 64)

    # AdaptiveAvgPool1d(1) + Flatten + F.normalize(dim=1).
    pooled = jnp.mean(h.reshape(B, Ls, feat), axis=1)                 # (B, 64)
    ssq = jnp.sum(pooled * pooled, axis=1, keepdims=True)
    o_ref[...] = pooled * jax.lax.rsqrt(jnp.maximum(ssq, L2_EPS * L2_EPS))


# --------------------------- weight block packing --------------------------- #

def _pack_conv_weight(w, M):
    """Conv1d(k=4, s=2, p=1, bias=False) weight (Cout, Cin, 4) -> block
    structured (W_main, W_dn, W_up), each (M*Cin, (M//2)*Cout), for the packed
    stride-stream layout (lane = stream*Cin + channel).

    Output stream r at row j covers input positions 2r + k - 1 (k = 0..3) of
    the same row, except tap 0 of r=0 (input stream M-1 at row j-1 -> W_dn)
    and tap 3 of r=M/2-1 (input stream 0 at row j+1 -> W_up)."""
    cout, cin, k = w.shape
    assert k == 4
    R = M // 2
    wt = jnp.transpose(w, (2, 1, 0)).astype(jnp.float32)   # (4, Cin, Cout)
    wm = jnp.zeros((M * cin, R * cout), jnp.float32)
    wd = jnp.zeros((M * cin, R * cout), jnp.float32)
    wu = jnp.zeros((M * cin, R * cout), jnp.float32)
    for r in range(R):
        cs = slice(r * cout, (r + 1) * cout)
        wm = wm.at[(2 * r) * cin:(2 * r + 1) * cin, cs].add(wt[1])       # k=1
        wm = wm.at[(2 * r + 1) * cin:(2 * r + 2) * cin, cs].add(wt[2])   # k=2
        if r > 0:                                                        # k=0
            wm = wm.at[(2 * r - 1) * cin:(2 * r) * cin, cs].add(wt[0])
        else:
            wd = wd.at[(M - 1) * cin:M * cin, cs].add(wt[0])
        if r < R - 1:                                                    # k=3
            wm = wm.at[(2 * r + 2) * cin:(2 * r + 3) * cin, cs].add(wt[3])
        else:
            wu = wu.at[0:cin, cs].add(wt[3])
    return wm, wd, wu


# ------------------------------ JAX wrapper -------------------------------- #

def sim_conv4_forward(x, params):
    """x: (B, T, 1) with T % 16 == 0  ->  (B, 64) L2-normalized features."""
    B, T, _ = x.shape
    if T % 16 != 0 or T < 16:
        raise ValueError("SimConv4 Pallas kernel requires T to be a multiple of 16")
    Ls = T // 16
    N = B * Ls

    # torch does squeeze(-1) + unsqueeze(1) -> NCW (B, 1, T).  We keep the
    # packed (lane-dense) layout: row b*Ls + j, lane m <-> x[b, 16*j + m].
    xs = jnp.squeeze(x, -1).astype(jnp.float32).reshape(N, 16)

    # Block-structured weights, assembled outside the kernel (O(KiB) work).
    w1 = _pack_conv_weight(params["w1"], 16)   # (16, 64) x 3
    w2 = _pack_conv_weight(params["w2"], 8)    # (64, 64) x 3
    w3 = _pack_conv_weight(params["w3"], 4)    # (64, 64) x 3
    w4 = _pack_conv_weight(params["w4"], 2)    # (64, 64) x 3

    # Explicit VMEM budget (generous: ~10-15 live (N,64) f32 values at peak
    # plus ~160 KiB of weights), capped below physical limits on all gens.
    act_bytes = N * 64 * 4
    vmem_limit = int(min(64 << 20, max(2 << 20, 32 * act_bytes)))

    return pl.pallas_call(
        _simconv4_kernel,
        out_shape=jax.ShapeDtypeStruct((B, 64), jnp.float32),
        in_specs=[pl.BlockSpec(memory_space=pltpu.VMEM)] * 13,
        out_specs=pl.BlockSpec(memory_space=pltpu.VMEM),
        compiler_params=pltpu.CompilerParams(vmem_limit_bytes=vmem_limit),
    )(xs, *w1, *w2, *w3, *w4)


# ----------------------------- parameter init ------------------------------ #

def xavier_normal(key, cout, cin, k):
    # nn.init.xavier_normal_ on a Conv1d weight of shape (cout, cin, k).
    fan_in, fan_out = cin * k, cout * k
    std = math.sqrt(2.0 / (fan_in + fan_out))
    return std * jax.random.normal(key, (cout, cin, k), jnp.float32)


if __name__ == "__main__":
    key = jax.random.PRNGKey(0)
    kx, k1, k2, k3, k4 = jax.random.split(key, 5)

    B, T = 2, 128  # length must survive 4 stride-2 convs (T % 16 == 0)
    x = jax.random.normal(kx, (B, T, 1), jnp.float32)

    params = {
        "w1": xavier_normal(k1, 8, 1, 4),
        "w2": xavier_normal(k2, 16, 8, 4),
        "w3": xavier_normal(k3, 32, 16, 4),
        "w4": xavier_normal(k4, 64, 32, 4),
    }
    # BatchNorm gamma=1 / beta=0 (the module's init) are folded into the
    # kernel; training-mode batch statistics are computed inside it.

    out = jax.jit(sim_conv4_forward)(x, params)
    out = jax.block_until_ready(out)
    assert out.shape == (B, 64) and out.dtype == jnp.float32
    print("KERNEL_OK")
</pallas_src>

<mosaic_0001>
module attributes {stable_mosaic.version = 11 : i64} {
  func.func @_simconv4_kernel(%arg0: memref<16x16xf32, #tpu.memory_space<vmem>>, %arg1: memref<16x64xf32, #tpu.memory_space<vmem>>, %arg2: memref<16x64xf32, #tpu.memory_space<vmem>>, %arg3: memref<16x64xf32, #tpu.memory_space<vmem>>, %arg4: memref<64x64xf32, #tpu.memory_space<vmem>>, %arg5: memref<64x64xf32, #tpu.memory_space<vmem>>, %arg6: memref<64x64xf32, #tpu.memory_space<vmem>>, %arg7: memref<64x64xf32, #tpu.memory_space<vmem>>, %arg8: memref<64x64xf32, #tpu.memory_space<vmem>>, %arg9: memref<64x64xf32, #tpu.memory_space<vmem>>, %arg10: memref<64x64xf32, #tpu.memory_space<vmem>>, %arg11: memref<64x64xf32, #tpu.memory_space<vmem>>, %arg12: memref<64x64xf32, #tpu.memory_space<vmem>>, %arg13: memref<2x64xf32, #tpu.memory_space<vmem>>) attributes {dimension_semantics = [], scalar_prefetch = 0 : i64, scratch_operands = 0 : i64, tpu.core_type = #tpu.core_type<tc>} {
    %0 = tpu.iota {dimensions = array<i32: 0>} : vector<16x1xi32>
    %c8_i32 = arith.constant 8 : i32
    %c0_i32 = arith.constant 0 : i32
    %1 = arith.cmpi eq, %c8_i32, %c0_i32 : i32
    %c1_i32 = arith.constant 1 : i32
    %2 = arith.select %1, %c1_i32, %c8_i32 : i32
    %3 = vector.broadcast %2 : i32 to vector<16x1xi32>
    %4 = arith.remsi %0, %3 : vector<16x1xi32>
    %c0_i32_0 = arith.constant 0 : i32
    %5 = vector.broadcast %c0_i32_0 : i32 to vector<16x1xi32>
    %6 = arith.cmpi ne, %4, %5 : vector<16x1xi32>
    %c0_i32_1 = arith.constant 0 : i32
    %7 = vector.broadcast %c0_i32_1 : i32 to vector<16x1xi32>
    %8 = arith.cmpi slt, %4, %7 : vector<16x1xi32>
    %c0_i32_2 = arith.constant 0 : i32
    %9 = arith.cmpi slt, %2, %c0_i32_2 : i32
    %10 = vector.broadcast %9 : i1 to vector<16x1xi1>
    %11 = vector.broadcast %10 : vector<16x1xi1> to vector<16x1xi1>
    %12 = arith.xori %8, %11 : vector<16x1xi1>
    %13 = arith.andi %12, %6 : vector<16x1xi1>
    %14 = vector.broadcast %2 : i32 to vector<16x1xi32>
    %15 = arith.addi %4, %14 : vector<16x1xi32>
    %16 = arith.select %13, %15, %4 : vector<16x1xi1>, vector<16x1xi32>
    %c0_i32_3 = arith.constant 0 : i32
    %17 = vector.broadcast %c0_i32_3 : i32 to vector<16x1xi32>
    %18 = arith.cmpi ne, %16, %17 : vector<16x1xi32>
    %c7_i32 = arith.constant 7 : i32
    %19 = vector.broadcast %c7_i32 : i32 to vector<16x1xi32>
    %20 = arith.cmpi ne, %16, %19 : vector<16x1xi32>
    %c0 = arith.constant 0 : index
    %c0_4 = arith.constant 0 : index
    %21 = vector.load %arg0[%c0, %c0_4] : memref<16x16xf32, #tpu.memory_space<vmem>>, vector<16x16xf32>
    %c0_5 = arith.constant 0 : index
    %c0_6 = arith.constant 0 : index
    %22 = vector.load %arg1[%c0_5, %c0_6] : memref<16x64xf32, #tpu.memory_space<vmem>>, vector<16x64xf32>
    %c0_7 = arith.constant 0 : index
    %c0_8 = arith.constant 0 : index
    %23 = vector.load %arg2[%c0_7, %c0_8] : memref<16x64xf32, #tpu.memory_space<vmem>>, vector<16x64xf32>
    %c0_9 = arith.constant 0 : index
    %c0_10 = arith.constant 0 : index
    %24 = vector.load %arg3[%c0_9, %c0_10] : memref<16x64xf32, #tpu.memory_space<vmem>>, vector<16x64xf32>
    %c1_i32_11 = arith.constant 1 : i32
    %25 = tpu.dynamic_rotate %21 by %c1_i32_11 dim 0 : vector<16x16xf32>, i32 -> vector<16x16xf32>
    %cst = arith.constant 0.000000e+00 : f32
    %26 = vector.shape_cast %18 : vector<16x1xi1> to vector<16x1xi1>
    %27 = vector.broadcast %26 : vector<16x1xi1> to vector<16x16xi1>
    %28 = vector.broadcast %cst : f32 to vector<16x16xf32>
    %29 = arith.select %27, %25, %28 : vector<16x16xi1>, vector<16x16xf32>
    %c15_i32 = arith.constant 15 : i32
    %30 = tpu.dynamic_rotate %21 by %c15_i32 dim 0 : vector<16x16xf32>, i32 -> vector<16x16xf32>
    %cst_12 = arith.constant 0.000000e+00 : f32
    %31 = vector.shape_cast %20 : vector<16x1xi1> to vector<16x1xi1>
    %32 = vector.broadcast %31 : vector<16x1xi1> to vector<16x16xi1>
    %33 = vector.broadcast %cst_12 : f32 to vector<16x16xf32>
    %34 = arith.select %32, %30, %33 : vector<16x16xi1>, vector<16x16xf32>
    %cst_13 = arith.constant dense<0.000000e+00> : vector<16x64xf32>
    %35 = tpu.matmul %21, %22, %cst_13 {dimension_numbers = #tpu.dot_dimension_numbers<[1], [0], [0], [1], [0, 0, 1, 1], [], []>} : vector<16x16xf32>, vector<16x64xf32>, vector<16x64xf32> -> vector<16x64xf32>
    %cst_14 = arith.constant dense<0.000000e+00> : vector<16x64xf32>
    %36 = tpu.matmul %29, %23, %cst_14 {dimension_numbers = #tpu.dot_dimension_numbers<[1], [0], [0], [1], [0, 0, 1, 1], [], []>} : vector<16x16xf32>, vector<16x64xf32>, vector<16x64xf32> -> vector<16x64xf32>
    %37 = arith.addf %35, %36 : vector<16x64xf32>
    %cst_15 = arith.constant dense<0.000000e+00> : vector<16x64xf32>
    %38 = tpu.matmul %34, %24, %cst_15 {dimension_numbers = #tpu.dot_dimension_numbers<[1], [0], [0], [1], [0, 0, 1, 1], [], []>} : vector<16x16xf32>, vector<16x64xf32>, vector<16x64xf32> -> vector<16x64xf32>
    %39 = arith.addf %37, %38 : vector<16x64xf32>
    %cst_16 = arith.constant dense<0.000000e+00> : vector<64xf32>
    %40 = vector.multi_reduction <add>, %39, %cst_16 [0] : vector<16x64xf32> to vector<64xf32>
    %41 = vector.shape_cast %40 : vector<64xf32> to vector<1x64xf32>
    %42 = arith.mulf %39, %39 : vector<16x64xf32>
    %cst_17 = arith.constant dense<0.000000e+00> : vector<64xf32>
    %43 = vector.multi_reduction <add>, %42, %cst_17 [0] : vector<16x64xf32> to vector<64xf32>
    %44 = vector.shape_cast %43 : vector<64xf32> to vector<1x64xf32>
    %45 = tpu.iota {dimensions = array<i32: 0>} : vector<64x64xi32>
    %c8_i32_18 = arith.constant 8 : i32
    %c0_i32_19 = arith.constant 0 : i32
    %46 = arith.cmpi eq, %c8_i32_18, %c0_i32_19 : i32
    %c1_i32_20 = arith.constant 1 : i32
    %47 = arith.select %46, %c1_i32_20, %c8_i32_18 : i32
    %48 = vector.broadcast %47 : i32 to vector<64x64xi32>
    %49 = arith.remsi %45, %48 : vector<64x64xi32>
    %c0_i32_21 = arith.constant 0 : i32
    %50 = vector.broadcast %c0_i32_21 : i32 to vector<64x64xi32>
    %51 = arith.cmpi ne, %49, %50 : vector<64x64xi32>
    %c0_i32_22 = arith.constant 0 : i32
    %52 = vector.broadcast %c0_i32_22 : i32 to vector<64x64xi32>
    %53 = arith.cmpi slt, %49, %52 : vector<64x64xi32>
    %c0_i32_23 = arith.constant 0 : i32
    %54 = arith.cmpi slt, %47, %c0_i32_23 : i32
    %55 = vector.broadcast %54 : i1 to vector<64x64xi1>
    %56 = vector.broadcast %55 : vector<64x64xi1> to vector<64x64xi1>
    %57 = arith.xori %53, %56 : vector<64x64xi1>
    %58 = arith.andi %57, %51 : vector<64x64xi1>
    %59 = vector.broadcast %47 : i32 to vector<64x64xi32>
    %60 = arith.addi %49, %59 : vector<64x64xi32>
    %61 = arith.select %58, %60, %49 : vector<64x64xi1>, vector<64x64xi32>
    %62 = tpu.iota {dimensions = array<i32: 1>} : vector<64x64xi32>
    %c8_i32_24 = arith.constant 8 : i32
    %c0_i32_25 = arith.constant 0 : i32
    %63 = arith.cmpi eq, %c8_i32_24, %c0_i32_25 : i32
    %c1_i32_26 = arith.constant 1 : i32
    %64 = arith.select %63, %c1_i32_26, %c8_i32_24 : i32
    %65 = vector.broadcast %64 : i32 to vector<64x64xi32>
    %66 = arith.remsi %62, %65 : vector<64x64xi32>
    %c0_i32_27 = arith.constant 0 : i32
    %67 = vector.broadcast %c0_i32_27 : i32 to vector<64x64xi32>
    %68 = arith.cmpi ne, %66, %67 : vector<64x64xi32>
    %c0_i32_28 = arith.constant 0 : i32
    %69 = vector.broadcast %c0_i32_28 : i32 to vector<64x64xi32>
    %70 = arith.cmpi slt, %66, %69 : vector<64x64xi32>
    %c0_i32_29 = arith.constant 0 : i32
    %71 = arith.cmpi slt, %64, %c0_i32_29 : i32
    %72 = vector.broadcast %71 : i1 to vector<64x64xi1>
    %73 = vector.broadcast %72 : vector<64x64xi1> to vector<64x64xi1>
    %74 = arith.xori %70, %73 : vector<64x64xi1>
    %75 = arith.andi %74, %68 : vector<64x64xi1>
    %76 = vector.broadcast %64 : i32 to vector<64x64xi32>
    %77 = arith.addi %66, %76 : vector<64x64xi32>
    %78 = arith.select %75, %77, %66 : vector<64x64xi1>, vector<64x64xi32>
    %79 = arith.cmpi eq, %61, %78 : vector<64x64xi32>
    %80 = arith.extui %79 : vector<64x64xi1> to vector<64x64xi32>
    %81 = arith.sitofp %80 : vector<64x64xi32> to vector<64x64xf32>
    %cst_30 = arith.constant dense<0.000000e+00> : vector<1x64xf32>
    %82 = tpu.matmul %41, %81, %cst_30 {dimension_numbers = #tpu.dot_dimension_numbers<[1], [0], [0], [1], [0, 0, 1, 1], [], []>} : vector<1x64xf32>, vector<64x64xf32>, vector<1x64xf32> -> vector<1x64xf32>
    %cst_31 = arith.constant dense<0.000000e+00> : vector<1x64xf32>
    %83 = tpu.matmul %44, %81, %cst_31 {dimension_numbers = #tpu.dot_dimension_numbers<[1], [0], [0], [1], [0, 0, 1, 1], [], []>} : vector<1x64xf32>, vector<64x64xf32>, vector<1x64xf32> -> vector<1x64xf32>
    %cst_32 = arith.constant 1.280000e+02 : f32
    %84 = vector.broadcast %cst_32 : f32 to vector<1x64xf32>
    %85 = arith.divf %82, %84 : vector<1x64xf32>
    %cst_33 = arith.constant 1.280000e+02 : f32
    %86 = vector.broadcast %cst_33 : f32 to vector<1x64xf32>
    %87 = arith.divf %83, %86 : vector<1x64xf32>
    %88 = arith.mulf %85, %85 : vector<1x64xf32>
    %89 = arith.subf %87, %88 : vector<1x64xf32>
    %cst_34 = arith.constant 0.000000e+00 : f32
    %90 = vector.broadcast %cst_34 : f32 to vector<1x64xf32>
    %91 = arith.maximumf %89, %90 : vector<1x64xf32>
    %cst_35 = arith.constant 9.99999974E-6 : f32
    %92 = vector.broadcast %cst_35 : f32 to vector<1x64xf32>
    %93 = arith.addf %91, %92 : vector<1x64xf32>
    %94 = math.rsqrt %93 : vector<1x64xf32>
    %95 = vector.broadcast %85 : vector<1x64xf32> to vector<16x64xf32>
    %96 = arith.subf %39, %95 : vector<16x64xf32>
    %97 = vector.broadcast %94 : vector<1x64xf32> to vector<16x64xf32>
    %98 = arith.mulf %96, %97 : vector<16x64xf32>
    %cst_36 = arith.constant 0.000000e+00 : f32
    %99 = vector.broadcast %cst_36 : f32 to vector<16x64xf32>
    %100 = arith.maximumf %98, %99 : vector<16x64xf32>
    %c0_37 = arith.constant 0 : index
    %c0_38 = arith.constant 0 : index
    %101 = vector.load %arg4[%c0_37, %c0_38] : memref<64x64xf32, #tpu.memory_space<vmem>>, vector<64x64xf32>
    %c0_39 = arith.constant 0 : index
    %c0_40 = arith.constant 0 : index
    %102 = vector.load %arg5[%c0_39, %c0_40] : memref<64x64xf32, #tpu.memory_space<vmem>>, vector<64x64xf32>
    %c0_41 = arith.constant 0 : index
    %c0_42 = arith.constant 0 : index
    %103 = vector.load %arg6[%c0_41, %c0_42] : memref<64x64xf32, #tpu.memory_space<vmem>>, vector<64x64xf32>
    %c1_i32_43 = arith.constant 1 : i32
    %104 = tpu.dynamic_rotate %100 by %c1_i32_43 dim 0 : vector<16x64xf32>, i32 -> vector<16x64xf32>
    %cst_44 = arith.constant 0.000000e+00 : f32
    %105 = vector.shape_cast %18 : vector<16x1xi1> to vector<16x1xi1>
    %106 = vector.broadcast %105 : vector<16x1xi1> to vector<16x64xi1>
    %107 = vector.broadcast %cst_44 : f32 to vector<16x64xf32>
    %108 = arith.select %106, %104, %107 : vector<16x64xi1>, vector<16x64xf32>
    %c15_i32_45 = arith.constant 15 : i32
    %109 = tpu.dynamic_rotate %100 by %c15_i32_45 dim 0 : vector<16x64xf32>, i32 -> vector<16x64xf32>
    %cst_46 = arith.constant 0.000000e+00 : f32
    %110 = vector.shape_cast %20 : vector<16x1xi1> to vector<16x1xi1>
    %111 = vector.broadcast %110 : vector<16x1xi1> to vector<16x64xi1>
    %112 = vector.broadcast %cst_46 : f32 to vector<16x64xf32>
    %113 = arith.select %111, %109, %112 : vector<16x64xi1>, vector<16x64xf32>
    %cst_47 = arith.constant dense<0.000000e+00> : vector<16x64xf32>
    %114 = tpu.matmul %100, %101, %cst_47 {dimension_numbers = #tpu.dot_dimension_numbers<[1], [0], [0], [1], [0, 0, 1, 1], [], []>} : vector<16x64xf32>, vector<64x64xf32>, vector<16x64xf32> -> vector<16x64xf32>
    %cst_48 = arith.constant dense<0.000000e+00> : vector<16x64xf32>
    %115 = tpu.matmul %108, %102, %cst_48 {dimension_numbers = #tpu.dot_dimension_numbers<[1], [0], [0], [1], [0, 0, 1, 1], [], []>} : vector<16x64xf32>, vector<64x64xf32>, vector<16x64xf32> -> vector<16x64xf32>
    %116 = arith.addf %114, %115 : vector<16x64xf32>
    %cst_49 = arith.constant dense<0.000000e+00> : vector<16x64xf32>
    %117 = tpu.matmul %113, %103, %cst_49 {dimension_numbers = #tpu.dot_dimension_numbers<[1], [0], [0], [1], [0, 0, 1, 1], [], []>} : vector<16x64xf32>, vector<64x64xf32>, vector<16x64xf32> -> vector<16x64xf32>
    %118 = arith.addf %116, %117 : vector<16x64xf32>
    %cst_50 = arith.constant dense<0.000000e+00> : vector<64xf32>
    %119 = vector.multi_reduction <add>, %118, %cst_50 [0] : vector<16x64xf32> to vector<64xf32>
    %120 = vector.shape_cast %119 : vector<64xf32> to vector<1x64xf32>
    %121 = arith.mulf %118, %118 : vector<16x64xf32>
    %cst_51 = arith.constant dense<0.000000e+00> : vector<64xf32>
    %122 = vector.multi_reduction <add>, %121, %cst_51 [0] : vector<16x64xf32> to vector<64xf32>
    %123 = vector.shape_cast %122 : vector<64xf32> to vector<1x64xf32>
    %124 = tpu.iota {dimensions = array<i32: 0>} : vector<64x64xi32>
    %c16_i32 = arith.constant 16 : i32
    %c0_i32_52 = arith.constant 0 : i32
    %125 = arith.cmpi eq, %c16_i32, %c0_i32_52 : i32
    %c1_i32_53 = arith.constant 1 : i32
    %126 = arith.select %125, %c1_i32_53, %c16_i32 : i32
    %127 = vector.broadcast %126 : i32 to vector<64x64xi32>
    %128 = arith.remsi %124, %127 : vector<64x64xi32>
    %c0_i32_54 = arith.constant 0 : i32
    %129 = vector.broadcast %c0_i32_54 : i32 to vector<64x64xi32>
    %130 = arith.cmpi ne, %128, %129 : vector<64x64xi32>
    %c0_i32_55 = arith.constant 0 : i32
    %131 = vector.broadcast %c0_i32_55 : i32 to vector<64x64xi32>
    %132 = arith.cmpi slt, %128, %131 : vector<64x64xi32>
    %c0_i32_56 = arith.constant 0 : i32
    %133 = arith.cmpi slt, %126, %c0_i32_56 : i32
    %134 = vector.broadcast %133 : i1 to vector<64x64xi1>
    %135 = vector.broadcast %134 : vector<64x64xi1> to vector<64x64xi1>
    %136 = arith.xori %132, %135 : vector<64x64xi1>
    %137 = arith.andi %136, %130 : vector<64x64xi1>
    %138 = vector.broadcast %126 : i32 to vector<64x64xi32>
    %139 = arith.addi %128, %138 : vector<64x64xi32>
    %140 = arith.select %137, %139, %128 : vector<64x64xi1>, vector<64x64xi32>
    %141 = tpu.iota {dimensions = array<i32: 1>} : vector<64x64xi32>
    %c16_i32_57 = arith.constant 16 : i32
    %c0_i32_58 = arith.constant 0 : i32
    %142 = arith.cmpi eq, %c16_i32_57, %c0_i32_58 : i32
    %c1_i32_59 = arith.constant 1 : i32
    %143 = arith.select %142, %c1_i32_59, %c16_i32_57 : i32
    %144 = vector.broadcast %143 : i32 to vector<64x64xi32>
    %145 = arith.remsi %141, %144 : vector<64x64xi32>
    %c0_i32_60 = arith.constant 0 : i32
    %146 = vector.broadcast %c0_i32_60 : i32 to vector<64x64xi32>
    %147 = arith.cmpi ne, %145, %146 : vector<64x64xi32>
    %c0_i32_61 = arith.constant 0 : i32
    %148 = vector.broadcast %c0_i32_61 : i32 to vector<64x64xi32>
    %149 = arith.cmpi slt, %145, %148 : vector<64x64xi32>
    %c0_i32_62 = arith.constant 0 : i32
    %150 = arith.cmpi slt, %143, %c0_i32_62 : i32
    %151 = vector.broadcast %150 : i1 to vector<64x64xi1>
    %152 = vector.broadcast %151 : vector<64x64xi1> to vector<64x64xi1>
    %153 = arith.xori %149, %152 : vector<64x64xi1>
    %154 = arith.andi %153, %147 : vector<64x64xi1>
    %155 = vector.broadcast %143 : i32 to vector<64x64xi32>
    %156 = arith.addi %145, %155 : vector<64x64xi32>
    %157 = arith.select %154, %156, %145 : vector<64x64xi1>, vector<64x64xi32>
    %158 = arith.cmpi eq, %140, %157 : vector<64x64xi32>
    %159 = arith.extui %158 : vector<64x64xi1> to vector<64x64xi32>
    %160 = arith.sitofp %159 : vector<64x64xi32> to vector<64x64xf32>
    %cst_63 = arith.constant dense<0.000000e+00> : vector<1x64xf32>
    %161 = tpu.matmul %120, %160, %cst_63 {dimension_numbers = #tpu.dot_dimension_numbers<[1], [0], [0], [1], [0, 0, 1, 1], [], []>} : vector<1x64xf32>, vector<64x64xf32>, vector<1x64xf32> -> vector<1x64xf32>
    %cst_64 = arith.constant dense<0.000000e+00> : vector<1x64xf32>
    %162 = tpu.matmul %123, %160, %cst_64 {dimension_numbers = #tpu.dot_dimension_numbers<[1], [0], [0], [1], [0, 0, 1, 1], [], []>} : vector<1x64xf32>, vector<64x64xf32>, vector<1x64xf32> -> vector<1x64xf32>
    %cst_65 = arith.constant 6.400000e+01 : f32
    %163 = vector.broadcast %cst_65 : f32 to vector<1x64xf32>
    %164 = arith.divf %161, %163 : vector<1x64xf32>
    %cst_66 = arith.constant 6.400000e+01 : f32
    %165 = vector.broadcast %cst_66 : f32 to vector<1x64xf32>
    %166 = arith.divf %162, %165 : vector<1x64xf32>
    %167 = arith.mulf %164, %164 : vector<1x64xf32>
    %168 = arith.subf %166, %167 : vector<1x64xf32>
    %cst_67 = arith.constant 0.000000e+00 : f32
    %169 = vector.broadcast %cst_67 : f32 to vector<1x64xf32>
    %170 = arith.maximumf %168, %169 : vector<1x64xf32>
    %cst_68 = arith.constant 9.99999974E-6 : f32
    %171 = vector.broadcast %cst_68 : f32 to vector<1x64xf32>
    %172 = arith.addf %170, %171 : vector<1x64xf32>
    %173 = math.rsqrt %172 : vector<1x64xf32>
    %174 = vector.broadcast %164 : vector<1x64xf32> to vector<16x64xf32>
    %175 = arith.subf %118, %174 : vector<16x64xf32>
    %176 = vector.broadcast %173 : vector<1x64xf32> to vector<16x64xf32>
    %177 = arith.mulf %175, %176 : vector<16x64xf32>
    %cst_69 = arith.constant 0.000000e+00 : f32
    %178 = vector.broadcast %cst_69 : f32 to vector<16x64xf32>
    %179 = arith.maximumf %177, %178 : vector<16x64xf32>
    %c0_70 = arith.constant 0 : index
    %c0_71 = arith.constant 0 : index
    %180 = vector.load %arg7[%c0_70, %c0_71] : memref<64x64xf32, #tpu.memory_space<vmem>>, vector<64x64xf32>
    %c0_72 = arith.constant 0 : index
    %c0_73 = arith.constant 0 : index
    %181 = vector.load %arg8[%c0_72, %c0_73] : memref<64x64xf32, #tpu.memory_space<vmem>>, vector<64x64xf32>
    %c0_74 = arith.constant 0 : index
    %c0_75 = arith.constant 0 : index
    %182 = vector.load %arg9[%c0_74, %c0_75] : memref<64x64xf32, #tpu.memory_space<vmem>>, vector<64x64xf32>
    %c1_i32_76 = arith.constant 1 : i32
    %183 = tpu.dynamic_rotate %179 by %c1_i32_76 dim 0 : vector<16x64xf32>, i32 -> vector<16x64xf32>
    %cst_77 = arith.constant 0.000000e+00 : f32
    %184 = vector.shape_cast %18 : vector<16x1xi1> to vector<16x1xi1>
    %185 = vector.broadcast %184 : vector<16x1xi1> to vector<16x64xi1>
    %186 = vector.broadcast %cst_77 : f32 to vector<16x64xf32>
    %187 = arith.select %185, %183, %186 : vector<16x64xi1>, vector<16x64xf32>
    %c15_i32_78 = arith.constant 15 : i32
    %188 = tpu.dynamic_rotate %179 by %c15_i32_78 dim 0 : vector<16x64xf32>, i32 -> vector<16x64xf32>
    %cst_79 = arith.constant 0.000000e+00 : f32
    %189 = vector.shape_cast %20 : vector<16x1xi1> to vector<16x1xi1>
    %190 = vector.broadcast %189 : vector<16x1xi1> to vector<16x64xi1>
    %191 = vector.broadcast %cst_79 : f32 to vector<16x64xf32>
    %192 = arith.select %190, %188, %191 : vector<16x64xi1>, vector<16x64xf32>
    %cst_80 = arith.constant dense<0.000000e+00> : vector<16x64xf32>
    %193 = tpu.matmul %179, %180, %cst_80 {dimension_numbers = #tpu.dot_dimension_numbers<[1], [0], [0], [1], [0, 0, 1, 1], [], []>} : vector<16x64xf32>, vector<64x64xf32>, vector<16x64xf32> -> vector<16x64xf32>
    %cst_81 = arith.constant dense<0.000000e+00> : vector<16x64xf32>
    %194 = tpu.matmul %187, %181, %cst_81 {dimension_numbers = #tpu.dot_dimension_numbers<[1], [0], [0], [1], [0, 0, 1, 1], [], []>} : vector<16x64xf32>, vector<64x64xf32>, vector<16x64xf32> -> vector<16x64xf32>
    %195 = arith.addf %193, %194 : vector<16x64xf32>
    %cst_82 = arith.constant dense<0.000000e+00> : vector<16x64xf32>
    %196 = tpu.matmul %192, %182, %cst_82 {dimension_numbers = #tpu.dot_dimension_numbers<[1], [0], [0], [1], [0, 0, 1, 1], [], []>} : vector<16x64xf32>, vector<64x64xf32>, vector<16x64xf32> -> vector<16x64xf32>
    %197 = arith.addf %195, %196 : vector<16x64xf32>
    %cst_83 = arith.constant dense<0.000000e+00> : vector<64xf32>
    %198 = vector.multi_reduction <add>, %197, %cst_83 [0] : vector<16x64xf32> to vector<64xf32>
    %199 = vector.shape_cast %198 : vector<64xf32> to vector<1x64xf32>
    %200 = arith.mulf %197, %197 : vector<16x64xf32>
    %cst_84 = arith.constant dense<0.000000e+00> : vector<64xf32>
    %201 = vector.multi_reduction <add>, %200, %cst_84 [0] : vector<16x64xf32> to vector<64xf32>
    %202 = vector.shape_cast %201 : vector<64xf32> to vector<1x64xf32>
    %203 = tpu.iota {dimensions = array<i32: 0>} : vector<64x64xi32>
    %c32_i32 = arith.constant 32 : i32
    %c0_i32_85 = arith.constant 0 : i32
    %204 = arith.cmpi eq, %c32_i32, %c0_i32_85 : i32
    %c1_i32_86 = arith.constant 1 : i32
    %205 = arith.select %204, %c1_i32_86, %c32_i32 : i32
    %206 = vector.broadcast %205 : i32 to vector<64x64xi32>
    %207 = arith.remsi %203, %206 : vector<64x64xi32>
    %c0_i32_87 = arith.constant 0 : i32
    %208 = vector.broadcast %c0_i32_87 : i32 to vector<64x64xi32>
    %209 = arith.cmpi ne, %207, %208 : vector<64x64xi32>
    %c0_i32_88 = arith.constant 0 : i32
    %210 = vector.broadcast %c0_i32_88 : i32 to vector<64x64xi32>
    %211 = arith.cmpi slt, %207, %210 : vector<64x64xi32>
    %c0_i32_89 = arith.constant 0 : i32
    %212 = arith.cmpi slt, %205, %c0_i32_89 : i32
    %213 = vector.broadcast %212 : i1 to vector<64x64xi1>
    %214 = vector.broadcast %213 : vector<64x64xi1> to vector<64x64xi1>
    %215 = arith.xori %211, %214 : vector<64x64xi1>
    %216 = arith.andi %215, %209 : vector<64x64xi1>
    %217 = vector.broadcast %205 : i32 to vector<64x64xi32>
    %218 = arith.addi %207, %217 : vector<64x64xi32>
    %219 = arith.select %216, %218, %207 : vector<64x64xi1>, vector<64x64xi32>
    %220 = tpu.iota {dimensions = array<i32: 1>} : vector<64x64xi32>
    %c32_i32_90 = arith.constant 32 : i32
    %c0_i32_91 = arith.constant 0 : i32
    %221 = arith.cmpi eq, %c32_i32_90, %c0_i32_91 : i32
    %c1_i32_92 = arith.constant 1 : i32
    %222 = arith.select %221, %c1_i32_92, %c32_i32_90 : i32
    %223 = vector.broadcast %222 : i32 to vector<64x64xi32>
    %224 = arith.remsi %220, %223 : vector<64x64xi32>
    %c0_i32_93 = arith.constant 0 : i32
    %225 = vector.broadcast %c0_i32_93 : i32 to vector<64x64xi32>
    %226 = arith.cmpi ne, %224, %225 : vector<64x64xi32>
    %c0_i32_94 = arith.constant 0 : i32
    %227 = vector.broadcast %c0_i32_94 : i32 to vector<64x64xi32>
    %228 = arith.cmpi slt, %224, %227 : vector<64x64xi32>
    %c0_i32_95 = arith.constant 0 : i32
    %229 = arith.cmpi slt, %222, %c0_i32_95 : i32
    %230 = vector.broadcast %229 : i1 to vector<64x64xi1>
    %231 = vector.broadcast %230 : vector<64x64xi1> to vector<64x64xi1>
    %232 = arith.xori %228, %231 : vector<64x64xi1>
    %233 = arith.andi %232, %226 : vector<64x64xi1>
    %234 = vector.broadcast %222 : i32 to vector<64x64xi32>
    %235 = arith.addi %224, %234 : vector<64x64xi32>
    %236 = arith.select %233, %235, %224 : vector<64x64xi1>, vector<64x64xi32>
    %237 = arith.cmpi eq, %219, %236 : vector<64x64xi32>
    %238 = arith.extui %237 : vector<64x64xi1> to vector<64x64xi32>
    %239 = arith.sitofp %238 : vector<64x64xi32> to vector<64x64xf32>
    %cst_96 = arith.constant dense<0.000000e+00> : vector<1x64xf32>
    %240 = tpu.matmul %199, %239, %cst_96 {dimension_numbers = #tpu.dot_dimension_numbers<[1], [0], [0], [1], [0, 0, 1, 1], [], []>} : vector<1x64xf32>, vector<64x64xf32>, vector<1x64xf32> -> vector<1x64xf32>
    %cst_97 = arith.constant dense<0.000000e+00> : vector<1x64xf32>
    %241 = tpu.matmul %202, %239, %cst_97 {dimension_numbers = #tpu.dot_dimension_numbers<[1], [0], [0], [1], [0, 0, 1, 1], [], []>} : vector<1x64xf32>, vector<64x64xf32>, vector<1x64xf32> -> vector<1x64xf32>
    %cst_98 = arith.constant 3.200000e+01 : f32
    %242 = vector.broadcast %cst_98 : f32 to vector<1x64xf32>
    %243 = arith.divf %240, %242 : vector<1x64xf32>
    %cst_99 = arith.constant 3.200000e+01 : f32
    %244 = vector.broadcast %cst_99 : f32 to vector<1x64xf32>
    %245 = arith.divf %241, %244 : vector<1x64xf32>
    %246 = arith.mulf %243, %243 : vector<1x64xf32>
    %247 = arith.subf %245, %246 : vector<1x64xf32>
    %cst_100 = arith.constant 0.000000e+00 : f32
    %248 = vector.broadcast %cst_100 : f32 to vector<1x64xf32>
    %249 = arith.maximumf %247, %248 : vector<1x64xf32>
    %cst_101 = arith.constant 9.99999974E-6 : f32
    %250 = vector.broadcast %cst_101 : f32 to vector<1x64xf32>
    %251 = arith.addf %249, %250 : vector<1x64xf32>
    %252 = math.rsqrt %251 : vector<1x64xf32>
    %253 = vector.broadcast %243 : vector<1x64xf32> to vector<16x64xf32>
    %254 = arith.subf %197, %253 : vector<16x64xf32>
    %255 = vector.broadcast %252 : vector<1x64xf32> to vector<16x64xf32>
    %256 = arith.mulf %254, %255 : vector<16x64xf32>
    %cst_102 = arith.constant 0.000000e+00 : f32
    %257 = vector.broadcast %cst_102 : f32 to vector<16x64xf32>
    %258 = arith.maximumf %256, %257 : vector<16x64xf32>
    %c0_103 = arith.constant 0 : index
    %c0_104 = arith.constant 0 : index
    %259 = vector.load %arg10[%c0_103, %c0_104] : memref<64x64xf32, #tpu.memory_space<vmem>>, vector<64x64xf32>
    %c0_105 = arith.constant 0 : index
    %c0_106 = arith.constant 0 : index
    %260 = vector.load %arg11[%c0_105, %c0_106] : memref<64x64xf32, #tpu.memory_space<vmem>>, vector<64x64xf32>
    %c0_107 = arith.constant 0 : index
    %c0_108 = arith.constant 0 : index
    %261 = vector.load %arg12[%c0_107, %c0_108] : memref<64x64xf32, #tpu.memory_space<vmem>>, vector<64x64xf32>
    %c1_i32_109 = arith.constant 1 : i32
    %262 = tpu.dynamic_rotate %258 by %c1_i32_109 dim 0 : vector<16x64xf32>, i32 -> vector<16x64xf32>
    %cst_110 = arith.constant 0.000000e+00 : f32
    %263 = vector.shape_cast %18 : vector<16x1xi1> to vector<16x1xi1>
    %264 = vector.broadcast %263 : vector<16x1xi1> to vector<16x64xi1>
    %265 = vector.broadcast %cst_110 : f32 to vector<16x64xf32>
    %266 = arith.select %264, %262, %265 : vector<16x64xi1>, vector<16x64xf32>
    %c15_i32_111 = arith.constant 15 : i32
    %267 = tpu.dynamic_rotate %258 by %c15_i32_111 dim 0 : vector<16x64xf32>, i32 -> vector<16x64xf32>
    %cst_112 = arith.constant 0.000000e+00 : f32
    %268 = vector.shape_cast %20 : vector<16x1xi1> to vector<16x1xi1>
    %269 = vector.broadcast %268 : vector<16x1xi1> to vector<16x64xi1>
    %270 = vector.broadcast %cst_112 : f32 to vector<16x64xf32>
    %271 = arith.select %269, %267, %270 : vector<16x64xi1>, vector<16x64xf32>
    %cst_113 = arith.constant dense<0.000000e+00> : vector<16x64xf32>
    %272 = tpu.matmul %258, %259, %cst_113 {dimension_numbers = #tpu.dot_dimension_numbers<[1], [0], [0], [1], [0, 0, 1, 1], [], []>} : vector<16x64xf32>, vector<64x64xf32>, vector<16x64xf32> -> vector<16x64xf32>
    %cst_114 = arith.constant dense<0.000000e+00> : vector<16x64xf32>
    %273 = tpu.matmul %266, %260, %cst_114 {dimension_numbers = #tpu.dot_dimension_numbers<[1], [0], [0], [1], [0, 0, 1, 1], [], []>} : vector<16x64xf32>, vector<64x64xf32>, vector<16x64xf32> -> vector<16x64xf32>
    %274 = arith.addf %272, %273 : vector<16x64xf32>
    %cst_115 = arith.constant dense<0.000000e+00> : vector<16x64xf32>
    %275 = tpu.matmul %271, %261, %cst_115 {dimension_numbers = #tpu.dot_dimension_numbers<[1], [0], [0], [1], [0, 0, 1, 1], [], []>} : vector<16x64xf32>, vector<64x64xf32>, vector<16x64xf32> -> vector<16x64xf32>
    %276 = arith.addf %274, %275 : vector<16x64xf32>
    %cst_116 = arith.constant dense<0.000000e+00> : vector<64xf32>
    %277 = vector.multi_reduction <add>, %276, %cst_116 [0] : vector<16x64xf32> to vector<64xf32>
    %278 = vector.shape_cast %277 : vector<64xf32> to vector<1x64xf32>
    %279 = arith.mulf %276, %276 : vector<16x64xf32>
    %cst_117 = arith.constant dense<0.000000e+00> : vector<64xf32>
    %280 = vector.multi_reduction <add>, %279, %cst_117 [0] : vector<16x64xf32> to vector<64xf32>
    %281 = vector.shape_cast %280 : vector<64xf32> to vector<1x64xf32>
    %cst_118 = arith.constant 1.600000e+01 : f32
    %282 = vector.broadcast %cst_118 : f32 to vector<1x64xf32>
    %283 = arith.divf %278, %282 : vector<1x64xf32>
    %cst_119 = arith.constant 1.600000e+01 : f32
    %284 = vector.broadcast %cst_119 : f32 to vector<1x64xf32>
    %285 = arith.divf %281, %284 : vector<1x64xf32>
    %286 = arith.mulf %283, %283 : vector<1x64xf32>
    %287 = arith.subf %285, %286 : vector<1x64xf32>
    %cst_120 = arith.constant 0.000000e+00 : f32
    %288 = vector.broadcast %cst_120 : f32 to vector<1x64xf32>
    %289 = arith.maximumf %287, %288 : vector<1x64xf32>
    %cst_121 = arith.constant 9.99999974E-6 : f32
    %290 = vector.broadcast %cst_121 : f32 to vector<1x64xf32>
    %291 = arith.addf %289, %290 : vector<1x64xf32>
    %292 = math.rsqrt %291 : vector<1x64xf32>
    %293 = vector.broadcast %283 : vector<1x64xf32> to vector<16x64xf32>
    %294 = arith.subf %276, %293 : vector<16x64xf32>
    %295 = vector.broadcast %292 : vector<1x64xf32> to vector<16x64xf32>
    %296 = arith.mulf %294, %295 : vector<16x64xf32>
    %cst_122 = arith.constant 0.000000e+00 : f32
    %297 = vector.broadcast %cst_122 : f32 to vector<16x64xf32>
    %298 = arith.maximumf %296, %297 : vector<16x64xf32>
    %299 = vector.shape_cast %298 : vector<16x64xf32> to vector<2x8x64xf32>
    %cst_123 = arith.constant dense<0.000000e+00> : vector<2x64xf32>
    %300 = vector.multi_reduction <add>, %299, %cst_123 [1] : vector<2x8x64xf32> to vector<2x64xf32>
    %cst_124 = arith.constant 8.000000e+00 : f32
    %301 = vector.broadcast %cst_124 : f32 to vector<2x64xf32>
    %302 = arith.divf %300, %301 : vector<2x64xf32>
    %303 = arith.mulf %302, %302 : vector<2x64xf32>
    %cst_125 = arith.constant dense<0.000000e+00> : vector<2xf32>
    %304 = vector.multi_reduction <add>, %303, %cst_125 [1] : vector<2x64xf32> to vector<2xf32>
    %305 = vector.shape_cast %304 : vector<2xf32> to vector<2x1xf32>
    %cst_126 = arith.constant 1.000000e-24 : f32
    %306 = vector.broadcast %cst_126 : f32 to vector<2x1xf32>
    %307 = arith.maximumf %305, %306 : vector<2x1xf32>
    %308 = math.rsqrt %307 : vector<2x1xf32>
    %309 = vector.broadcast %308 : vector<2x1xf32> to vector<2x64xf32>
    %310 = arith.mulf %302, %309 : vector<2x64xf32>
    %c0_127 = arith.constant 0 : index
    %c0_128 = arith.constant 0 : index
    %311 = vector.load %arg13[%c0_127, %c0_128] : memref<2x64xf32, #tpu.memory_space<vmem>>, vector<2x64xf32>
    tpu.vector_store %arg13[%c0_127, %c0_128], %310 {strides = array<i32>} : memref<2x64xf32, #tpu.memory_space<vmem>>, vector<2x64xf32>,
    return
  }
}

</mosaic_0001>

<llo_original>
// kernel: squeeze.61
$region0: #{squeeze.61}
  %s0 = inlined_call_operand.vmem [shape: f32[2,128], index: 0, kind: input, shape index: {}]
  %s1 = inlined_call_operand.vmem [shape: f32[16,16], index: 1, kind: output, shape index: {}]
  $region1: #{squeeze.61} parent=0
    #allocation0 [shape = 'u8[4096]{0}', space=vmem, size = 0x1000, scoped, tag = 'scoped mem for input reshape']
    %s3 = sshllo.u32 0, 2
    %v4 = vld [vmem:[%s0] sm:%s3]
    %5 = vst [vmem:[#allocation0] sm:%s3] %v4
    %v6 = vld [vmem:[#allocation0] sm:$0x3]
    %vm7 = vcmask 130048
    %8 = vst.msk [vmem:[%s1] ss:$8 sm:$0x3] %vm7, %v6
    %v9 = vld [vmem:[#allocation0] sm:$0x3]
    %10 = vrot.lane.b32.xlu0 %v9, 112
    %v11 = vpop.permute.xlu0 %10
    %vm12 = vcmask 130048
    %s13 = scalar_lea.vmem %s1, 1
    %14 = vst.msk [vmem:[%s13] ss:$8 sm:$0x3] %vm12, %v11
    %v15 = vld [vmem:[#allocation0] sm:$0x3]
    %16 = vrot.lane.b32.xlu0 %v15, 96
    %v17 = vpop.permute.xlu0 %16
    %vm18 = vcmask 130048
    %s19 = scalar_lea.vmem %s1, 2
    %20 = vst.msk [vmem:[%s19] ss:$8 sm:$0x3] %vm18, %v17
    %v21 = vld [vmem:[#allocation0] sm:$0x3]
    %22 = vrot.lane.b32.xlu0 %v21, 80
    %v23 = vpop.permute.xlu0 %22
    %vm24 = vcmask 130048
    %s25 = scalar_lea.vmem %s1, 3
    %26 = vst.msk [vmem:[%s25] ss:$8 sm:$0x3] %vm24, %v23
    %v27 = vld [vmem:[#allocation0] sm:$0x3]
    %28 = vrot.lane.b32.xlu0 %v27, 64
    %v29 = vpop.permute.xlu0 %28
    %vm30 = vcmask 130048
    %s31 = scalar_lea.vmem %s1, 4
    %32 = vst.msk [vmem:[%s31] ss:$8 sm:$0x3] %vm30, %v29
    %v33 = vld [vmem:[#allocation0] sm:$0x3]
    %34 = vrot.lane.b32.xlu0 %v33, 48
    %v35 = vpop.permute.xlu0 %34
    %vm36 = vcmask 130048
    %s37 = scalar_lea.vmem %s1, 5
    %38 = vst.msk [vmem:[%s37] ss:$8 sm:$0x3] %vm36, %v35
    %v39 = vld [vmem:[#allocation0] sm:$0x3]
    %40 = vrot.lane.b32.xlu0 %v39, 32
    %v41 = vpop.permute.xlu0 %40
    %vm42 = vcmask 130048
    %s43 = scalar_lea.vmem %s1, 6
    %44 = vst.msk [vmem:[%s43] ss:$8 sm:$0x3] %vm42, %v41
    %v45 = vld [vmem:[#allocation0] sm:$0x3]
    %46 = vrot.lane.b32.xlu0 %v45, 16
    %v47 = vpop.permute.xlu0 %46
    %vm48 = vcmask 130048
    %s49 = scalar_lea.vmem %s1, 7
    %50 = vst.msk [vmem:[%s49] ss:$8 sm:$0x3] %vm48, %v47

// kernel: sim_conv4_forward.1
$region0: #{sim_conv4_forward.1}
  #allocation0 [shape = 'u32[]', space=smem, size = 0x4, offset = 0x4, fixed_abs, tag = 'smem constant byte address 0x4 - core index']
  #allocation1 [shape = 'u32[144,128]{1,0:T(1,128)}', space=vmem, size = 0x12000, scoped, tag = 'internal scratch']
  %s0 = inlined_call_operand.vmem [shape: f32[16,16], index: 0, kind: input, shape index: {}]
  %s1 = inlined_call_operand.vmem [shape: f32[16,64], index: 1, kind: input, shape index: {}]
  %s2 = inlined_call_operand.vmem [shape: f32[16,64], index: 2, kind: input, shape index: {}]
  %s3 = inlined_call_operand.vmem [shape: f32[16,64], index: 3, kind: input, shape index: {}]
  %s4 = inlined_call_operand.vmem [shape: f32[64,64], index: 4, kind: input, shape index: {}]
  %s5 = inlined_call_operand.vmem [shape: f32[64,64], index: 5, kind: input, shape index: {}]
  %s6 = inlined_call_operand.vmem [shape: f32[64,64], index: 6, kind: input, shape index: {}]
  %s7 = inlined_call_operand.vmem [shape: f32[64,64], index: 7, kind: input, shape index: {}]
  %s8 = inlined_call_operand.vmem [shape: f32[64,64], index: 8, kind: input, shape index: {}]
  %s9 = inlined_call_operand.vmem [shape: f32[64,64], index: 9, kind: input, shape index: {}]
  %s10 = inlined_call_operand.vmem [shape: f32[64,64], index: 10, kind: input, shape index: {}]
  %s11 = inlined_call_operand.vmem [shape: f32[64,64], index: 11, kind: input, shape index: {}]
  %s12 = inlined_call_operand.vmem [shape: f32[64,64], index: 12, kind: input, shape index: {}]
  %s13 = inlined_call_operand.hbm [shape: f32[2,64], index: 13, kind: output, shape index: {}]
  %s14 = sld [smem:[#allocation0]]
  $region62: #{sim_conv4_forward.1} parent=0
    _
  %s16 = ssub.s32 1, %s14
  %s17 = scalar_select 0, %s16, %s14
  $region1: #{sim_conv4_forward.1} parent=0
    #allocation2 [shape = 'u8[1024]{0}', space=vmem, size = 0x400, scoped, tag = 'output window, operand 0, single buffered']
    #allocation3 [shape = 's32[1]{0}', space=sflag, size = 0x4, scoped, tag = 'scoped memory for sim_conv4_forward.1']
    %18 = vsyncpa [#allocation3], 0
    // Predicated region
    $region2: #{sim_conv4_forward.1} parent=1 // pred_check
      _
    $region3: #{sim_conv4_forward.1} parent=1 // pred_check_branch
      %20 = sbr.rel (0) target = $region5
    $region4: #{sim_conv4_forward.1} parent=1 // pred_region
      _
    $region5: #{sim_conv4_forward.1} parent=1 // pred_fallthru
      _
    // Predicated region
    $region6: #{sim_conv4_forward.1} parent=1 // pred_check
      _
    $region7: #{sim_conv4_forward.1} parent=1 // pred_check_branch
      %22 = sbr.rel (0) target = $region9
    $region8: #{sim_conv4_forward.1} parent=1 // pred_region
      _
    $region9: #{sim_conv4_forward.1} parent=1 // pred_fallthru
      _
    // Predicated region
    $region10: #{sim_conv4_forward.1} parent=1 // pred_check
      _
    $region11: #{sim_conv4_forward.1} parent=1 // pred_check_branch
      %24 = sbr.rel (0) target = $region13
    $region12: #{sim_conv4_forward.1} parent=1 // pred_region
      _
    $region13: #{sim_conv4_forward.1} parent=1 // pred_fallthru
      _
    // Predicated region
    $region14: #{sim_conv4_forward.1} parent=1 // pred_check
      _
    $region15: #{sim_conv4_forward.1} parent=1 // pred_check_branch
      %26 = sbr.rel (0) target = $region17
    $region16: #{sim_conv4_forward.1} parent=1 // pred_region
      _
    $region17: #{sim_conv4_forward.1} parent=1 // pred_fallthru
      _
    // Predicated region
    $region18: #{sim_conv4_forward.1} parent=1 // pred_check
      _
    $region19: #{sim_conv4_forward.1} parent=1 // pred_check_branch
      %28 = sbr.rel (0) target = $region21
    $region20: #{sim_conv4_forward.1} parent=1 // pred_region
      _
    $region21: #{sim_conv4_forward.1} parent=1 // pred_fallthru
      _
    // Predicated region
    $region22: #{sim_conv4_forward.1} parent=1 // pred_check
      _
    $region23: #{sim_conv4_forward.1} parent=1 // pred_check_branch
      %30 = sbr.rel (0) target = $region25
    $region24: #{sim_conv4_forward.1} parent=1 // pred_region
      _
    $region25: #{sim_conv4_forward.1} parent=1 // pred_fallthru
      _
    // Predicated region
    $region26: #{sim_conv4_forward.1} parent=1 // pred_check
      _
    $region27: #{sim_conv4_forward.1} parent=1 // pred_check_branch
      %32 = sbr.rel (0) target = $region29
    $region28: #{sim_conv4_forward.1} parent=1 // pred_region
      _
    $region29: #{sim_conv4_forward.1} parent=1 // pred_fallthru
      _
    // Predicated region
    $region30: #{sim_conv4_forward.1} parent=1 // pred_check
      _
    $region31: #{sim_conv4_forward.1} parent=1 // pred_check_branch
      %34 = sbr.rel (0) target = $region33
    $region32: #{sim_conv4_forward.1} parent=1 // pred_region
      _
    $region33: #{sim_conv4_forward.1} parent=1 // pred_fallthru
      _
    // Predicated region
    $region34: #{sim_conv4_forward.1} parent=1 // pred_check
      _
    $region35: #{sim_conv4_forward.1} parent=1 // pred_check_branch
      %36 = sbr.rel (0) target = $region37
    $region36: #{sim_conv4_forward.1} parent=1 // pred_region
      _
    $region37: #{sim_conv4_forward.1} parent=1 // pred_fallthru
      _
    // Predicated region
    $region38: #{sim_conv4_forward.1} parent=1 // pred_check
      _
    $region39: #{sim_conv4_forward.1} parent=1 // pred_check_branch
      %38 = sbr.rel (0) target = $region41
    $region40: #{sim_conv4_forward.1} parent=1 // pred_region
      _
    $region41: #{sim_conv4_forward.1} parent=1 // pred_fallthru
      _
    // Predicated region
    $region42: #{sim_conv4_forward.1} parent=1 // pred_check
      _
    $region43: #{sim_conv4_forward.1} parent=1 // pred_check_branch
      %40 = sbr.rel (0) target = $region45
    $region44: #{sim_conv4_forward.1} parent=1 // pred_region
      _
    $region45: #{sim_conv4_forward.1} parent=1 // pred_fallthru
      _
    // Predicated region
    $region46: #{sim_conv4_forward.1} parent=1 // pred_check
      _
    $region47: #{sim_conv4_forward.1} parent=1 // pred_check_branch
      %42 = sbr.rel (0) target = $region49
    $region48: #{sim_conv4_forward.1} parent=1 // pred_region
      _
    $region49: #{sim_conv4_forward.1} parent=1 // pred_fallthru
      _
    // Predicated region
    $region50: #{sim_conv4_forward.1} parent=1 // pred_check
      _
    $region51: #{sim_conv4_forward.1} parent=1 // pred_check_branch
      %44 = sbr.rel (0) target = $region53
    $region52: #{sim_conv4_forward.1} parent=1 // pred_region
      _
    $region53: #{sim_conv4_forward.1} parent=1 // pred_fallthru
      _
    %v45 = vlaneseq
    %v46 = vshrl.u32 %v45, 7
    %v47 = vadd.s32 %v46, 8
    %vm48 = vcmp.lt.s32.totalorder %v46, 0
    %v49 = vsub.s32 0, %v46
    %v50 = vsel %vm48, %v49, %v46
    %v51 = vshrl.u32 %v50, 3
    %v52 = vand.u32 %v50, 7
    %v53 = vsub.s32 0, %v52
    %v54 = vsel %vm48, %v53, %v52
    %vm55 = vcmp.lt.s32.totalorder %v47, 0
    %v56 = vsub.s32 0, %v47
    %v57 = vsel %vm55, %v56, %v47
    %v58 = vshrl.u32 %v57, 3
    %v59 = vand.u32 %v57, 7
    %v60 = vsub.s32 0, %v59
    %v61 = vsel %vm55, %v60, %v59
    %vm62 = vcmp.ne.s32.totalorder %v54, 0
    %vm63 = vcmp.ne.s32.totalorder %v61, 0
    %vm64 = vcmp.lt.s32.totalorder %v54, 0
    %vm65 = vcmp.lt.s32.totalorder %v61, 0
    %vm66 = vmand %vm64, %vm62
    %vm67 = vmand %vm65, %vm63
    %v68 = vadd.s32 %v54, 8
    %v69 = vadd.s32 %v61, 8
    %v70 = vsel %vm66, %v68, %v54
    %v71 = vsel %vm67, %v69, %v61
    %vm72 = vcmp.ne.s32.totalorder %v70, 0
    %vm73 = vcmp.ne.s32.totalorder %v71, 0
    %vm74 = vcmp.ne.s32.totalorder %v70, 7
    %vm75 = vcmp.ne.s32.totalorder %v71, 7
    %v76 = vld [vmem:[%s0] sm:$0xff]
    %v77 = vld [vmem:[%s0 + $0x8] sm:$0xff]
    %v78 = vld [vmem:[%s1] sm:$0xff]
    %v79 = vld [vmem:[%s1 + $0x8] sm:$0xff]
    %v80 = vld [vmem:[%s2] sm:$0xff]
    %v81 = vld [vmem:[%s2 + $0x8] sm:$0xff]
    %v82 = vld [vmem:[%s3] sm:$0xff]
    %v83 = vld [vmem:[%s3 + $0x8] sm:$0xff]
    %v84 = vrot.slane %v76, 7
    %v85 = vrot.slane %v77, 7
    %vm86 = vcmp.lt.s32.totalorder %v46, 1
    %v87 = vsel %vm86, %v84, %v85
    %v88 = vsel %vm86, %v85, %v84
    %v89 = vsel %vm72, 1, 0
    %v90 = vsel %vm73, 1, 0
    %vm91 = vcmp.eq.s32.totalorder %v89, 1
    %vm92 = vcmp.eq.s32.totalorder %v90, 1
    %v93 = vsel %vm91, %v88, 0.0
    %v94 = vsel %vm92, %v87, 0.0
    %v95 = vrot.slane %v76, 1
    %v96 = vrot.slane %v77, 1
    %vm97 = vcmp.lt.s32.totalorder %v46, 7
    %v98 = vsel %vm97, %v95, %v96
    %v99 = vsel %vm97, %v96, %v95
    %v100 = vsel %vm74, 1, 0
    %v101 = vsel %vm75, 1, 0
    %vm102 = vcmp.eq.s32.totalorder %v100, 1
    %vm103 = vcmp.eq.s32.totalorder %v101, 1
    %v104 = vsel %vm102, %v98, 0.0
    %v105 = vsel %vm103, %v99, 0.0
    %vm106 = vcmask 130048
    %v108 = vsel %vm106, %v93, 0
    %v111 = vsel %vm106, %v94, 0
    %113 = vmatprep.subr.mxu0 0.0
    %114 = vmatpush1.msra.mxu0 %v80
    %115 = vmatprep.subr.mxu0 0.0
    %116 = vmatpush1.msra.mxu0 %v81
    %117 = vmatprep.subr.mxu0 0.0
    %118 = vmatpush1.msra.mxu0 0.0
    %119 = vmatprep.subr.mxu0 0.0
    %120 = vmatpush1.msra.mxu0 0.0
    %121 = vmatprep.subr.mxu0 0.0
    %122 = vmatpush1.msra.mxu0 0.0
    %123 = vmatprep.subr.mxu0 0.0
    %124 = vmatpush1.msra.mxu0 0.0
    %125 = vmatprep.subr.mxu0 0.0
    %126 = vmatpush1.msra.mxu0 0.0
    %127 = vmatprep.subr.mxu0 0.0
    %128 = vmatpush1.msra.mxu0 0.0
    %129 = vmatprep.subr.mxu0 0.0
    %130 = vmatpush1.msra.mxu0 0.0
    %131 = vmatprep.subr.mxu0 0.0
    %132 = vmatpush1.msra.mxu0 0.0
    %133 = vmatprep.subr.mxu0 0.0
    %134 = vmatpush1.msra.mxu0 0.0
    %135 = vmatprep.subr.mxu0 0.0
    %136 = vmatpush1.msra.mxu0 0.0
    %137 = vmatprep.subr.mxu0 0.0
    %138 = vmatpush1.msra.mxu0 0.0
    %139 = vmatprep.subr.mxu0 0.0
    %140 = vmatpush1.msra.mxu0 0.0
    %141 = vmatprep.subr.mxu0 0.0
    %142 = vmatpush1.msra.mxu0 0.0
    %143 = vmatprep.subr.mxu0 0.0
    %144 = vmatpush1.msra.mxu0 0.0
    %145 = vmatprep.subr.mxu0 0.0
    %146 = vmatpush1.msra.mxu0 0.0
    %147 = vmatprep.subr.mxu0 0.0
    %148 = vmatpush1.msra.mxu0 0.0
    %149 = vmatprep.subr.mxu0 0.0
    %150 = vmatpush1.msra.mxu0 0.0
    %151 = vmatprep.subr.mxu0 0.0
    %152 = vmatpush1.msra.mxu0 0.0
    %153 = vmatprep.subr.mxu0 0.0
    %154 = vmatpush1.msra.mxu0 0.0
    %155 = vmatprep.subr.mxu0 0.0
    %156 = vmatpush1.msra.mxu0 0.0
    %157 = vmatprep.subr.mxu0 0.0
    %158 = vmatpush1.msra.mxu0 0.0
    %159 = vmatprep.subr.mxu0 0.0
    %160 = vmatpush1.msra.mxu0 0.0
    %161 = vmatprep.subr.mxu0 0.0
    %162 = vmatpush1.msra.mxu0 0.0
    %163 = vmatprep.subr.mxu0 0.0
    %164 = vmatpush1.msra.mxu0 0.0
    %165 = vmatprep.subr.mxu0 0.0
    %166 = vmatpush1.msra.mxu0 0.0
    %167 = vmatprep.subr.mxu0 0.0
    %168 = vmatpush1.msra.mxu0 0.0
    %169 = vmatprep.subr.mxu0 0.0
    %170 = vmatpush1.msra.mxu0 0.0
    %171 = vmatprep.subr.mxu0 0.0
    %172 = vmatpush1.msra.mxu0 0.0
    %173 = vmatprep.subr.mxu0 0.0
    %174 = vmatpush1.msra.mxu0 0.0
    %175 = vmatprep.subr.mxu0 0.0
    %176 = vmatpush1.msra.mxu0 0.0
    %177 = vmatprep.mubr.f32.mxu0 0.0
    %178 = vmatmul.mubr.f32.gmra.mrb[0].mxu0 %v108
    %v179 = vpop.f32.mrb[0].mxu0
    %v180 = vadd.f32 0.0, %v179
    %v181 = vpop.f32.mrb[0].mxu0
    %182 = vmatprep.mubr.f32.mxu0 0.0
    %183 = vmatmul.mubr.f32.gmra.mrb[0].mxu0 %v111
    %v184 = vpop.f32.mrb[0].mxu0
    %v185 = vadd.f32 0.0, %v184
    %v186 = vpop.f32.mrb[0].mxu0
    %187 = vdwg.mxu0
    %v189 = vsel %vm106, %v76, 0
    %v192 = vsel %vm106, %v77, 0
    %194 = vmatprep.subr.mxu0 0.0
    %195 = vmatpush1.msra.mxu0 %v78
    %196 = vmatprep.subr.mxu0 0.0
    %197 = vmatpush1.msra.mxu0 %v79
    %198 = vmatprep.subr.mxu0 0.0
    %199 = vmatpush1.msra.mxu0 0.0
    %200 = vmatprep.subr.mxu0 0.0
    %201 = vmatpush1.msra.mxu0 0.0
    %202 = vmatprep.subr.mxu0 0.0
    %203 = vmatpush1.msra.mxu0 0.0
    %204 = vmatprep.subr.mxu0 0.0
    %205 = vmatpush1.msra.mxu0 0.0
    %206 = vmatprep.subr.mxu0 0.0
    %207 = vmatpush1.msra.mxu0 0.0
    %208 = vmatprep.subr.mxu0 0.0
    %209 = vmatpush1.msra.mxu0 0.0
    %210 = vmatprep.subr.mxu0 0.0
    %211 = vmatpush1.msra.mxu0 0.0
    %212 = vmatprep.subr.mxu0 0.0
    %213 = vmatpush1.msra.mxu0 0.0
    %214 = vmatprep.subr.mxu0 0.0
    %215 = vmatpush1.msra.mxu0 0.0
    %216 = vmatprep.subr.mxu0 0.0
    %217 = vmatpush1.msra.mxu0 0.0
    %218 = vmatprep.subr.mxu0 0.0
    %219 = vmatpush1.msra.mxu0 0.0
    %220 = vmatprep.subr.mxu0 0.0
    %221 = vmatpush1.msra.mxu0 0.0
    %222 = vmatprep.subr.mxu0 0.0
    %223 = vmatpush1.msra.mxu0 0.0
    %224 = vmatprep.subr.mxu0 0.0
    %225 = vmatpush1.msra.mxu0 0.0
    %226 = vmatprep.subr.mxu0 0.0
    %227 = vmatpush1.msra.mxu0 0.0
    %228 = vmatprep.subr.mxu0 0.0
    %229 = vmatpush1.msra.mxu0 0.0
    %230 = vmatprep.subr.mxu0 0.0
    %231 = vmatpush1.msra.mxu0 0.0
    %232 = vmatprep.subr.mxu0 0.0
    %233 = vmatpush1.msra.mxu0 0.0
    %234 = vmatprep.subr.mxu0 0.0
    %235 = vmatpush1.msra.mxu0 0.0
    %236 = vmatprep.subr.mxu0 0.0
    %237 = vmatpush1.msra.mxu0 0.0
    %238 = vmatprep.subr.mxu0 0.0
    %239 = vmatpush1.msra.mxu0 0.0
    %240 = vmatprep.subr.mxu0 0.0
    %241 = vmatpush1.msra.mxu0 0.0
    %242 = vmatprep.subr.mxu0 0.0
    %243 = vmatpush1.msra.mxu0 0.0
    %244 = vmatprep.subr.mxu0 0.0
    %245 = vmatpush1.msra.mxu0 0.0
    %246 = vmatprep.subr.mxu0 0.0
    %247 = vmatpush1.msra.mxu0 0.0
    %248 = vmatprep.subr.mxu0 0.0
    %249 = vmatpush1.msra.mxu0 0.0
    %250 = vmatprep.subr.mxu0 0.0
    %251 = vmatpush1.msra.mxu0 0.0
    %252 = vmatprep.subr.mxu0 0.0
    %253 = vmatpush1.msra.mxu0 0.0
    %254 = vmatprep.subr.mxu0 0.0
    %255 = vmatpush1.msra.mxu0 0.0
    %256 = vmatprep.subr.mxu0 0.0
    %257 = vmatpush1.msra.mxu0 0.0
    %258 = vmatprep.mubr.f32.mxu0 0.0
    %259 = vmatmul.mubr.f32.gmra.mrb[0].mxu0 %v189
    %v260 = vpop.f32.mrb[0].mxu0
    %v261 = vadd.f32 %v180, %v260
    %v262 = vpop.f32.mrb[0].mxu0
    %263 = vmatprep.mubr.f32.mxu0 0.0
    %264 = vmatmul.mubr.f32.gmra.mrb[0].mxu0 %v192
    %v265 = vpop.f32.mrb[0].mxu0
    %v266 = vadd.f32 %v185, %v265
    %v267 = vpop.f32.mrb[0].mxu0
    %268 = vdwg.mxu0
    %v270 = vsel %vm106, %v104, 0
    %v273 = vsel %vm106, %v105, 0
    %275 = vmatprep.subr.mxu0 0.0
    %276 = vmatpush1.msra.mxu0 %v82
    %277 = vmatprep.subr.mxu0 0.0
    %278 = vmatpush1.msra.mxu0 %v83
    %279 = vmatprep.subr.mxu0 0.0
    %280 = vmatpush1.msra.mxu0 0.0
    %281 = vmatprep.subr.mxu0 0.0
    %282 = vmatpush1.msra.mxu0 0.0
    %283 = vmatprep.subr.mxu0 0.0
    %284 = vmatpush1.msra.mxu0 0.0
    %285 = vmatprep.subr.mxu0 0.0
    %286 = vmatpush1.msra.mxu0 0.0
    %287 = vmatprep.subr.mxu0 0.0
    %288 = vmatpush1.msra.mxu0 0.0
    %289 = vmatprep.subr.mxu0 0.0
    %290 = vmatpush1.msra.mxu0 0.0
    %291 = vmatprep.subr.mxu0 0.0
    %292 = vmatpush1.msra.mxu0 0.0
    %293 = vmatprep.subr.mxu0 0.0
    %294 = vmatpush1.msra.mxu0 0.0
    %295 = vmatprep.subr.mxu0 0.0
    %296 = vmatpush1.msra.mxu0 0.0
    %297 = vmatprep.subr.mxu0 0.0
    %298 = vmatpush1.msra.mxu0 0.0
    %299 = vmatprep.subr.mxu0 0.0
    %300 = vmatpush1.msra.mxu0 0.0
    %301 = vmatprep.subr.mxu0 0.0
    %302 = vmatpush1.msra.mxu0 0.0
    %303 = vmatprep.subr.mxu0 0.0
    %304 = vmatpush1.msra.mxu0 0.0
    %305 = vmatprep.subr.mxu0 0.0
    %306 = vmatpush1.msra.mxu0 0.0
    %307 = vmatprep.subr.mxu0 0.0
    %308 = vmatpush1.msra.mxu0 0.0
    %309 = vmatprep.subr.mxu0 0.0
    %310 = vmatpush1.msra.mxu0 0.0
    %311 = vmatprep.subr.mxu0 0.0
    %312 = vmatpush1.msra.mxu0 0.0
    %313 = vmatprep.subr.mxu0 0.0
    %314 = vmatpush1.msra.mxu0 0.0
    %315 = vmatprep.subr.mxu0 0.0
    %316 = vmatpush1.msra.mxu0 0.0
    %317 = vmatprep.subr.mxu0 0.0
    %318 = vmatpush1.msra.mxu0 0.0
    %319 = vmatprep.subr.mxu0 0.0
    %320 = vmatpush1.msra.mxu0 0.0
    %321 = vmatprep.subr.mxu0 0.0
    %322 = vmatpush1.msra.mxu0 0.0
    %323 = vmatprep.subr.mxu0 0.0
    %324 = vmatpush1.msra.mxu0 0.0
    %325 = vmatprep.subr.mxu0 0.0
    %326 = vmatpush1.msra.mxu0 0.0
    %327 = vmatprep.subr.mxu0 0.0
    %328 = vmatpush1.msra.mxu0 0.0
    %329 = vmatprep.subr.mxu0 0.0
    %330 = vmatpush1.msra.mxu0 0.0
    %331 = vmatprep.subr.mxu0 0.0
    %332 = vmatpush1.msra.mxu0 0.0
    %333 = vmatprep.subr.mxu0 0.0
    %334 = vmatpush1.msra.mxu0 0.0
    %335 = vmatprep.subr.mxu0 0.0
    %336 = vmatpush1.msra.mxu0 0.0
    %337 = vmatprep.subr.mxu0 0.0
    %338 = vmatpush1.msra.mxu0 0.0
    %339 = vmatprep.mubr.f32.mxu0 0.0
    %340 = vmatmul.mubr.f32.gmra.mrb[0].mxu0 %v270
    %v341 = vpop.f32.mrb[0].mxu0
    %v342 = vadd.f32 0.0, %v341
    %v343 = vpop.f32.mrb[0].mxu0
    %344 = vmatprep.mubr.f32.mxu0 0.0
    %345 = vmatmul.mubr.f32.gmra.mrb[0].mxu0 %v273
    %v346 = vpop.f32.mrb[0].mxu0
    %v347 = vadd.f32 0.0, %v346
    %v348 = vpop.f32.mrb[0].mxu0
    %349 = vdwg.mxu0
    %v350 = vadd.f32 %v261, %v342
    %v351 = vadd.f32 %v266, %v347
    %vm352 = vcmask 523264
    %v353 = vsel %vm352, %v350, 0.0
    %v354 = vsel %vm352, %v351, 0.0
    %v355 = vadd.f32 %v353, %v354
    %v356 = vrot.slane %v355, 4
    %v357 = vadd.f32 %v355, %v356
    %v358 = vrot.slane %v357, 2
    %v359 = vadd.f32 %v357, %v358
    %v360 = vrot.slane %v359, 1
    %v361 = vadd.f32 %v359, %v360
    %v362 = vmul.f32 %v350, %v350
    %v363 = vmul.f32 %v351, %v351
    %v364 = vsel %vm352, %v362, 0.0
    %v365 = vsel %vm352, %v363, 0.0
    %v366 = vadd.f32 %v364, %v365
    %v367 = vrot.slane %v366, 4
    %v368 = vadd.f32 %v366, %v367
    %v369 = vrot.slane %v368, 2
    %v370 = vadd.f32 %v368, %v369
    %v371 = vrot.slane %v370, 1
    %v372 = vadd.f32 %v370, %v371
    %v373 = vadd.s32 %v46, 16
    %v374 = vadd.s32 %v46, 24
    %v375 = vadd.s32 %v46, 32
    %v376 = vadd.s32 %v46, 40
    %v377 = vadd.s32 %v46, 48
    %v378 = vadd.s32 %v46, 56
    %vm379 = vcmp.lt.s32.totalorder %v373, 0
    %v380 = vsub.s32 0, %v373
    %v381 = vsel %vm379, %v380, %v373
    %v382 = vshrl.u32 %v381, 3
    %v383 = vand.u32 %v381, 7
    %v384 = vsub.s32 0, %v383
    %v385 = vsel %vm379, %v384, %v383
    %vm386 = vcmp.lt.s32.totalorder %v374, 0
    %v387 = vsub.s32 0, %v374
    %v388 = vsel %vm386, %v387, %v374
    %v389 = vshrl.u32 %v388, 3
    %v390 = vand.u32 %v388, 7
    %v391 = vsub.s32 0, %v390
    %v392 = vsel %vm386, %v391, %v390
    %vm393 = vcmp.lt.s32.totalorder %v375, 0
    %v394 = vsub.s32 0, %v375
    %v395 = vsel %vm393, %v394, %v375
    %v396 = vshrl.u32 %v395, 3
    %v397 = vand.u32 %v395, 7
    %v398 = vsub.s32 0, %v397
    %v399 = vsel %vm393, %v398, %v397
    %vm400 = vcmp.lt.s32.totalorder %v376, 0
    %v401 = vsub.s32 0, %v376
    %v402 = vsel %vm400, %v401, %v376
    %v403 = vshrl.u32 %v402, 3
    %v404 = vand.u32 %v402, 7
    %v405 = vsub.s32 0, %v404
    %v406 = vsel %vm400, %v405, %v404
    %vm407 = vcmp.lt.s32.totalorder %v377, 0
    %v408 = vsub.s32 0, %v377
    %v409 = vsel %vm407, %v408, %v377
    %v410 = vshrl.u32 %v409, 3
    %v411 = vand.u32 %v409, 7
    %v412 = vsub.s32 0, %v411
    %v413 = vsel %vm407, %v412, %v411
    %vm414 = vcmp.lt.s32.totalorder %v378, 0
    %v415 = vsub.s32 0, %v378
    %v416 = vsel %vm414, %v415, %v378
    %v417 = vshrl.u32 %v416, 3
    %v418 = vand.u32 %v416, 7
    %v419 = vsub.s32 0, %v418
    %v420 = vsel %vm414, %v419, %v418
    %vm421 = vcmp.ne.s32.totalorder %v385, 0
    %vm422 = vcmp.ne.s32.totalorder %v392, 0
    %vm423 = vcmp.ne.s32.totalorder %v399, 0
    %vm424 = vcmp.ne.s32.totalorder %v406, 0
    %vm425 = vcmp.ne.s32.totalorder %v413, 0
    %vm426 = vcmp.ne.s32.totalorder %v420, 0
    %vm427 = vcmp.lt.s32.totalorder %v385, 0
    %vm428 = vcmp.lt.s32.totalorder %v392, 0
    %vm429 = vcmp.lt.s32.totalorder %v399, 0
    %vm430 = vcmp.lt.s32.totalorder %v406, 0
    %vm431 = vcmp.lt.s32.totalorder %v413, 0
    %vm432 = vcmp.lt.s32.totalorder %v420, 0
    %vm433 = vmand %vm427, %vm421
    %vm434 = vmand %vm428, %vm422
    %vm435 = vmand %vm429, %vm423
    %vm436 = vmand %vm430, %vm424
    %vm437 = vmand %vm431, %vm425
    %vm438 = vmand %vm432, %vm426
    %v439 = vadd.s32 %v385, 8
    %v440 = vadd.s32 %v392, 8
    %v441 = vadd.s32 %v399, 8
    %v442 = vadd.s32 %v406, 8
    %v443 = vadd.s32 %v413, 8
    %v444 = vadd.s32 %v420, 8
    %v445 = vsel %vm433, %v439, %v385
    %v446 = vsel %vm434, %v440, %v392
    %v447 = vsel %vm435, %v441, %v399
    %v448 = vsel %vm436, %v442, %v406
    %v449 = vsel %vm437, %v443, %v413
    %v450 = vsel %vm438, %v444, %v420
    %v451 = vlaneseq
    %v452 = vand.u32 %v451, 127
    %vm453 = vcmp.lt.s32.totalorder %v452, 0
    %v454 = vsub.s32 0, %v452
    %v455 = vsel %vm453, %v454, %v452
    %v456 = vshrl.u32 %v455, 3
    %v457 = vand.u32 %v455, 7
    %v458 = vsub.s32 0, %v457
    %v459 = vsel %vm453, %v458, %v457
    %vm460 = vcmp.ne.s32.totalorder %v459, 0
    %vm461 = vcmp.lt.s32.totalorder %v459, 0
    %vm462 = vmand %vm461, %vm460
    %v463 = vadd.s32 %v459, 8
    %v464 = vsel %vm462, %v463, %v459
    %vm465 = vcmp.eq.s32.totalorder %v70, %v464
    %vm466 = vcmp.eq.s32.totalorder %v71, %v464
    %vm467 = vcmp.eq.s32.totalorder %v445, %v464
    %vm468 = vcmp.eq.s32.totalorder %v446, %v464
    %vm469 = vcmp.eq.s32.totalorder %v447, %v464
    %vm470 = vcmp.eq.s32.totalorder %v448, %v464
    %vm471 = vcmp.eq.s32.totalorder %v449, %v464
    %vm472 = vcmp.eq.s32.totalorder %v450, %v464
    %v473 = vsel %vm465, 1, 0
    %v474 = vsel %vm466, 1, 0
    %v475 = vsel %vm467, 1, 0
    %v476 = vsel %vm468, 1, 0
    %v477 = vsel %vm469, 1, 0
    %v478 = vsel %vm470, 1, 0
    %v479 = vsel %vm471, 1, 0
    %v480 = vsel %vm472, 1, 0
    %v481 = vcvt.s32.f32 %v473
    %v482 = vcvt.s32.f32 %v474
    %v483 = vcvt.s32.f32 %v475
    %v484 = vcvt.s32.f32 %v476
    %v485 = vcvt.s32.f32 %v477
    %v486 = vcvt.s32.f32 %v478
    %v487 = vcvt.s32.f32 %v479
    %v488 = vcvt.s32.f32 %v480
    %v490 = vsel %vm352, %v361, 0
    %492 = vmatprep.subr.mxu0 0.0
    %493 = vmatpush1.msra.mxu0 %v481
    %494 = vmatprep.subr.mxu0 0.0
    %495 = vmatpush1.msra.mxu0 %v482
    %496 = vmatprep.subr.mxu0 0.0
    %497 = vmatpush1.msra.mxu0 %v483
    %498 = vmatprep.subr.mxu0 0.0
    %499 = vmatpush1.msra.mxu0 %v484
    %500 = vmatprep.subr.mxu0 0.0
    %501 = vmatpush1.msra.mxu0 %v485
    %502 = vmatprep.subr.mxu0 0.0
    %503 = vmatpush1.msra.mxu0 %v486
    %504 = vmatprep.subr.mxu0 0.0
    %505 = vmatpush1.msra.mxu0 %v487
    %506 = vmatprep.subr.mxu0 0.0
    %507 = vmatpush1.msra.mxu0 %v488
    %508 = vmatprep.subr.mxu0 0.0
    %509 = vmatpush1.msra.mxu0 0.0
    %510 = vmatprep.subr.mxu0 0.0
    %511 = vmatpush1.msra.mxu0 0.0
    %512 = vmatprep.subr.mxu0 0.0
    %513 = vmatpush1.msra.mxu0 0.0
    %514 = vmatprep.subr.mxu0 0.0
    %515 = vmatpush1.msra.mxu0 0.0
    %516 = vmatprep.subr.mxu0 0.0
    %517 = vmatpush1.msra.mxu0 0.0
    %518 = vmatprep.subr.mxu0 0.0
    %519 = vmatpush1.msra.mxu0 0.0
    %520 = vmatprep.subr.mxu0 0.0
    %521 = vmatpush1.msra.mxu0 0.0
    %522 = vmatprep.subr.mxu0 0.0
    %523 = vmatpush1.msra.mxu0 0.0
    %524 = vmatprep.subr.mxu0 0.0
    %525 = vmatpush1.msra.mxu0 0.0
    %526 = vmatprep.subr.mxu0 0.0
    %527 = vmatpush1.msra.mxu0 0.0
    %528 = vmatprep.subr.mxu0 0.0
    %529 = vmatpush1.msra.mxu0 0.0
    %530 = vmatprep.subr.mxu0 0.0
    %531 = vmatpush1.msra.mxu0 0.0
    %532 = vmatprep.subr.mxu0 0.0
    %533 = vmatpush1.msra.mxu0 0.0
    %534 = vmatprep.subr.mxu0 0.0
    %535 = vmatpush1.msra.mxu0 0.0
    %536 = vmatprep.subr.mxu0 0.0
    %537 = vmatpush1.msra.mxu0 0.0
    %538 = vmatprep.subr.mxu0 0.0
    %539 = vmatpush1.msra.mxu0 0.0
    %540 = vmatprep.subr.mxu0 0.0
    %541 = vmatpush1.msra.mxu0 0.0
    %542 = vmatprep.subr.mxu0 0.0
    %543 = vmatpush1.msra.mxu0 0.0
    %544 = vmatprep.subr.mxu0 0.0
    %545 = vmatpush1.msra.mxu0 0.0
    %546 = vmatprep.subr.mxu0 0.0
    %547 = vmatpush1.msra.mxu0 0.0
    %548 = vmatprep.subr.mxu0 0.0
    %549 = vmatpush1.msra.mxu0 0.0
    %550 = vmatprep.subr.mxu0 0.0
    %551 = vmatpush1.msra.mxu0 0.0
    %552 = vmatprep.subr.mxu0 0.0
    %553 = vmatpush1.msra.mxu0 0.0
    %554 = vmatprep.subr.mxu0 0.0
    %555 = vmatpush1.msra.mxu0 0.0
    %556 = vmatprep.mubr.f32.mxu0 0.0
    %557 = vmatmul.mubr.f32.gmra.mrb[0].mxu0 %v490
    %v558 = vpop.f32.mrb[0].mxu0
    %v559 = vadd.f32 0.0, %v558
    %v560 = vpop.f32.mrb[0].mxu0
    %561 = vdwg.mxu0
    %v563 = vsel %vm352, %v372, 0
    %565 = vmatprep.subr.mxu0 0.0
    %566 = vmatpush1.msra.mxu0 %v481
    %567 = vmatprep.subr.mxu0 0.0
    %568 = vmatpush1.msra.mxu0 %v482
    %569 = vmatprep.subr.mxu0 0.0
    %570 = vmatpush1.msra.mxu0 %v483
    %571 = vmatprep.subr.mxu0 0.0
    %572 = vmatpush1.msra.mxu0 %v484
    %573 = vmatprep.subr.mxu0 0.0
    %574 = vmatpush1.msra.mxu0 %v485
    %575 = vmatprep.subr.mxu0 0.0
    %576 = vmatpush1.msra.mxu0 %v486
    %577 = vmatprep.subr.mxu0 0.0
    %578 = vmatpush1.msra.mxu0 %v487
    %579 = vmatprep.subr.mxu0 0.0
    %580 = vmatpush1.msra.mxu0 %v488
    %581 = vmatprep.subr.mxu0 0.0
    %582 = vmatpush1.msra.mxu0 0.0
    %583 = vmatprep.subr.mxu0 0.0
    %584 = vmatpush1.msra.mxu0 0.0
    %585 = vmatprep.subr.mxu0 0.0
    %586 = vmatpush1.msra.mxu0 0.0
    %587 = vmatprep.subr.mxu0 0.0
    %588 = vmatpush1.msra.mxu0 0.0
    %589 = vmatprep.subr.mxu0 0.0
    %590 = vmatpush1.msra.mxu0 0.0
    %591 = vmatprep.subr.mxu0 0.0
    %592 = vmatpush1.msra.mxu0 0.0
    %593 = vmatprep.subr.mxu0 0.0
    %594 = vmatpush1.msra.mxu0 0.0
    %595 = vmatprep.subr.mxu0 0.0
    %596 = vmatpush1.msra.mxu0 0.0
    %597 = vmatprep.subr.mxu0 0.0
    %598 = vmatpush1.msra.mxu0 0.0
    %599 = vmatprep.subr.mxu0 0.0
    %600 = vmatpush1.msra.mxu0 0.0
    %601 = vmatprep.subr.mxu0 0.0
    %602 = vmatpush1.msra.mxu0 0.0
    %603 = vmatprep.subr.mxu0 0.0
    %604 = vmatpush1.msra.mxu0 0.0
    %605 = vmatprep.subr.mxu0 0.0
    %606 = vmatpush1.msra.mxu0 0.0
    %607 = vmatprep.subr.mxu0 0.0
    %608 = vmatpush1.msra.mxu0 0.0
    %609 = vmatprep.subr.mxu0 0.0
    %610 = vmatpush1.msra.mxu0 0.0
    %611 = vmatprep.subr.mxu0 0.0
    %612 = vmatpush1.msra.mxu0 0.0
    %613 = vmatprep.subr.mxu0 0.0
    %614 = vmatpush1.msra.mxu0 0.0
    %615 = vmatprep.subr.mxu0 0.0
    %616 = vmatpush1.msra.mxu0 0.0
    %617 = vmatprep.subr.mxu0 0.0
    %618 = vmatpush1.msra.mxu0 0.0
    %619 = vmatprep.subr.mxu0 0.0
    %620 = vmatpush1.msra.mxu0 0.0
    %621 = vmatprep.subr.mxu0 0.0
    %622 = vmatpush1.msra.mxu0 0.0
    %623 = vmatprep.subr.mxu0 0.0
    %624 = vmatpush1.msra.mxu0 0.0
    %625 = vmatprep.subr.mxu0 0.0
    %626 = vmatpush1.msra.mxu0 0.0
    %627 = vmatprep.subr.mxu0 0.0
    %628 = vmatpush1.msra.mxu0 0.0
    %629 = vmatprep.mubr.f32.mxu0 0.0
    %630 = vmatmul.mubr.f32.gmra.mrb[0].mxu0 %v563
    %v631 = vpop.f32.mrb[0].mxu0
    %v632 = vadd.f32 0.0, %v631
    %v633 = vpop.f32.mrb[0].mxu0
    %634 = vdwg.mxu0
    %v635 = vrcp.pop 128.0
    %v636 = vmul.f32 %v559, %v635
    %v637 = vmul.f32 %v632, %v635
    %v638 = vmul.f32 %v636, %v636
    %v639 = vsub.f32 %v637, %v638
    %v640 = vmax.f32 %v639, 0.0
    %v641 = vadd.f32 %v640, 1e-05
    %v642 = vrsqrt.pop %v641
    %v643 = vlaneseq
    %v644 = vshrl.u32 %v643, 7
    %v645 = vsub.s32 0, %v644
    %v646 = vrot.slane %v636, %v645
    %v647 = vsub.f32 %v350, %v646
    %v648 = vsub.f32 %v351, %v646
    %v649 = vlaneseq
    %v650 = vshrl.u32 %v649, 7
    %v651 = vsub.s32 0, %v650
    %v652 = vrot.slane %v642, %v651
    %v653 = vmul.f32 %v647, %v652
    %v654 = vmul.f32 %v648, %v652
    %v655 = vmax.f32 %v653, 0.0
    %v656 = vmax.f32 %v654, 0.0
    %v657 = vld [vmem:[%s4] sm:$0xff]
    %v658 = vld [vmem:[%s4 + $0x8] sm:$0xff]
    %v659 = vld [vmem:[%s4 + $0x10] sm:$0xff]
    %v660 = vld [vmem:[%s4 + $0x18] sm:$0xff]
    %v661 = vld [vmem:[%s4 + $0x20] sm:$0xff]
    %v662 = vld [vmem:[%s4 + $0x28] sm:$0xff]
    %v663 = vld [vmem:[%s4 + $0x30] sm:$0xff]
    %v664 = vld [vmem:[%s4 + $0x38] sm:$0xff]
    %v665 = vld [vmem:[%s5] sm:$0xff]
    %v666 = vld [vmem:[%s5 + $0x8] sm:$0xff]
    %v667 = vld [vmem:[%s5 + $0x10] sm:$0xff]
    %v668 = vld [vmem:[%s5 + $0x18] sm:$0xff]
    %v669 = vld [vmem:[%s5 + $0x20] sm:$0xff]
    %v670 = vld [vmem:[%s5 + $0x28] sm:$0xff]
    %v671 = vld [vmem:[%s5 + $0x30] sm:$0xff]
    %v672 = vld [vmem:[%s5 + $0x38] sm:$0xff]
    %v673 = vld [vmem:[%s6] sm:$0xff]
    %v674 = vld [vmem:[%s6 + $0x8] sm:$0xff]
    %v675 = vld [vmem:[%s6 + $0x10] sm:$0xff]
    %v676 = vld [vmem:[%s6 + $0x18] sm:$0xff]
    %v677 = vld [vmem:[%s6 + $0x20] sm:$0xff]
    %v678 = vld [vmem:[%s6 + $0x28] sm:$0xff]
    %v679 = vld [vmem:[%s6 + $0x30] sm:$0xff]
    %v680 = vld [vmem:[%s6 + $0x38] sm:$0xff]
    %v681 = vrot.slane %v655, 7
    %v682 = vrot.slane %v656, 7
    %v683 = vsel %vm86, %v681, %v682
    %v684 = vsel %vm86, %v682, %v681
    %v685 = vsel %vm91, %v684, 0.0
    %v686 = vsel %vm92, %v683, 0.0
    %v687 = vrot.slane %v655, 1
    %v688 = vrot.slane %v656, 1
    %v689 = vsel %vm97, %v687, %v688
    %v690 = vsel %vm97, %v688, %v687
    %v691 = vsel %vm102, %v689, 0.0
    %v692 = vsel %vm103, %v690, 0.0
    %v694 = vsel %vm352, %v685, 0
    %v697 = vsel %vm352, %v686, 0
    %699 = vmatprep.subr.mxu0 0.0
    %700 = vmatpush1.msra.mxu0 %v665
    %701 = vmatprep.subr.mxu0 0.0
    %702 = vmatpush1.msra.mxu0 %v666
    %703 = vmatprep.subr.mxu0 0.0
    %704 = vmatpush1.msra.mxu0 %v667
    %705 = vmatprep.subr.mxu0 0.0
    %706 = vmatpush1.msra.mxu0 %v668
    %707 = vmatprep.subr.mxu0 0.0
    %708 = vmatpush1.msra.mxu0 %v669
    %709 = vmatprep.subr.mxu0 0.0
    %710 = vmatpush1.msra.mxu0 %v670
    %711 = vmatprep.subr.mxu0 0.0
    %712 = vmatpush1.msra.mxu0 %v671
    %713 = vmatprep.subr.mxu0 0.0
    %714 = vmatpush1.msra.mxu0 %v672
    %715 = vmatprep.subr.mxu0 0.0
    %716 = vmatpush1.msra.mxu0 0.0
    %717 = vmatprep.subr.mxu0 0.0
    %718 = vmatpush1.msra.mxu0 0.0
    %719 = vmatprep.subr.mxu0 0.0
    %720 = vmatpush1.msra.mxu0 0.0
    %721 = vmatprep.subr.mxu0 0.0
    %722 = vmatpush1.msra.mxu0 0.0
    %723 = vmatprep.subr.mxu0 0.0
    %724 = vmatpush1.msra.mxu0 0.0
    %725 = vmatprep.subr.mxu0 0.0
    %726 = vmatpush1.msra.mxu0 0.0
    %727 = vmatprep.subr.mxu0 0.0
    %728 = vmatpush1.msra.mxu0 0.0
    %729 = vmatprep.subr.mxu0 0.0
    %730 = vmatpush1.msra.mxu0 0.0
    %731 = vmatprep.subr.mxu0 0.0
    %732 = vmatpush1.msra.mxu0 0.0
    %733 = vmatprep.subr.mxu0 0.0
    %734 = vmatpush1.msra.mxu0 0.0
    %735 = vmatprep.subr.mxu0 0.0
    %736 = vmatpush1.msra.mxu0 0.0
    %737 = vmatprep.subr.mxu0 0.0
    %738 = vmatpush1.msra.mxu0 0.0
    %739 = vmatprep.subr.mxu0 0.0
    %740 = vmatpush1.msra.mxu0 0.0
    %741 = vmatprep.subr.mxu0 0.0
    %742 = vmatpush1.msra.mxu0 0.0
    %743 = vmatprep.subr.mxu0 0.0
    %744 = vmatpush1.msra.mxu0 0.0
    %745 = vmatprep.subr.mxu0 0.0
    %746 = vmatpush1.msra.mxu0 0.0
    %747 = vmatprep.subr.mxu0 0.0
    %748 = vmatpush1.msra.mxu0 0.0
    %749 = vmatprep.subr.mxu0 0.0
    %750 = vmatpush1.msra.mxu0 0.0
    %751 = vmatprep.subr.mxu0 0.0
    %752 = vmatpush1.msra.mxu0 0.0
    %753 = vmatprep.subr.mxu0 0.0
    %754 = vmatpush1.msra.mxu0 0.0
    %755 = vmatprep.subr.mxu0 0.0
    %756 = vmatpush1.msra.mxu0 0.0
    %757 = vmatprep.subr.mxu0 0.0
    %758 = vmatpush1.msra.mxu0 0.0
    %759 = vmatprep.subr.mxu0 0.0
    %760 = vmatpush1.msra.mxu0 0.0
    %761 = vmatprep.subr.mxu0 0.0
    %762 = vmatpush1.msra.mxu0 0.0
    %763 = vmatprep.mubr.f32.mxu0 0.0
    %764 = vmatmul.mubr.f32.gmra.mrb[0].mxu0 %v694
    %v765 = vpop.f32.mrb[0].mxu0
    %v766 = vadd.f32 0.0, %v765
    %v767 = vpop.f32.mrb[0].mxu0
    %768 = vmatprep.mubr.f32.mxu0 0.0
    %769 = vmatmul.mubr.f32.gmra.mrb[0].mxu0 %v697
    %v770 = vpop.f32.mrb[0].mxu0
    %v771 = vadd.f32 0.0, %v770
    %v772 = vpop.f32.mrb[0].mxu0
    %773 = vdwg.mxu0
    %v775 = vsel %vm352, %v655, 0
    %v778 = vsel %vm352, %v656, 0
    %780 = vmatprep.subr.mxu0 0.0
    %781 = vmatpush1.msra.mxu0 %v657
    %782 = vmatprep.subr.mxu0 0.0
    %783 = vmatpush1.msra.mxu0 %v658
    %784 = vmatprep.subr.mxu0 0.0
    %785 = vmatpush1.msra.mxu0 %v659
    %786 = vmatprep.subr.mxu0 0.0
    %787 = vmatpush1.msra.mxu0 %v660
    %788 = vmatprep.subr.mxu0 0.0
    %789 = vmatpush1.msra.mxu0 %v661
    %790 = vmatprep.subr.mxu0 0.0
    %791 = vmatpush1.msra.mxu0 %v662
    %792 = vmatprep.subr.mxu0 0.0
    %793 = vmatpush1.msra.mxu0 %v663
    %794 = vmatprep.subr.mxu0 0.0
    %795 = vmatpush1.msra.mxu0 %v664
    %796 = vmatprep.subr.mxu0 0.0
    %797 = vmatpush1.msra.mxu0 0.0
    %798 = vmatprep.subr.mxu0 0.0
    %799 = vmatpush1.msra.mxu0 0.0
    %800 = vmatprep.subr.mxu0 0.0
    %801 = vmatpush1.msra.mxu0 0.0
    %802 = vmatprep.subr.mxu0 0.0
    %803 = vmatpush1.msra.mxu0 0.0
    %804 = vmatprep.subr.mxu0 0.0
    %805 = vmatpush1.msra.mxu0 0.0
    %806 = vmatprep.subr.mxu0 0.0
    %807 = vmatpush1.msra.mxu0 0.0
    %808 = vmatprep.subr.mxu0 0.0
    %809 = vmatpush1.msra.mxu0 0.0
    %810 = vmatprep.subr.mxu0 0.0
    %811 = vmatpush1.msra.mxu0 0.0
    %812 = vmatprep.subr.mxu0 0.0
    %813 = vmatpush1.msra.mxu0 0.0
    %814 = vmatprep.subr.mxu0 0.0
    %815 = vmatpush1.msra.mxu0 0.0
    %816 = vmatprep.subr.mxu0 0.0
    %817 = vmatpush1.msra.mxu0 0.0
    %818 = vmatprep.subr.mxu0 0.0
    %819 = vmatpush1.msra.mxu0 0.0
    %820 = vmatprep.subr.mxu0 0.0
    %821 = vmatpush1.msra.mxu0 0.0
    %822 = vmatprep.subr.mxu0 0.0
    %823 = vmatpush1.msra.mxu0 0.0
    %824 = vmatprep.subr.mxu0 0.0
    %825 = vmatpush1.msra.mxu0 0.0
    %826 = vmatprep.subr.mxu0 0.0
    %827 = vmatpush1.msra.mxu0 0.0
    %828 = vmatprep.subr.mxu0 0.0
    %829 = vmatpush1.msra.mxu0 0.0
    %830 = vmatprep.subr.mxu0 0.0
    %831 = vmatpush1.msra.mxu0 0.0
    %832 = vmatprep.subr.mxu0 0.0
    %833 = vmatpush1.msra.mxu0 0.0
    %834 = vmatprep.subr.mxu0 0.0
    %835 = vmatpush1.msra.mxu0 0.0
    %836 = vmatprep.subr.mxu0 0.0
    %837 = vmatpush1.msra.mxu0 0.0
    %838 = vmatprep.subr.mxu0 0.0
    %839 = vmatpush1.msra.mxu0 0.0
    %840 = vmatprep.subr.mxu0 0.0
    %841 = vmatpush1.msra.mxu0 0.0
    %842 = vmatprep.subr.mxu0 0.0
    %843 = vmatpush1.msra.mxu0 0.0
    %844 = vmatprep.mubr.f32.mxu0 0.0
    %845 = vmatmul.mubr.f32.gmra.mrb[0].mxu0 %v775
    %v846 = vpop.f32.mrb[0].mxu0
    %v847 = vadd.f32 %v766, %v846
    %v848 = vpop.f32.mrb[0].mxu0
    %849 = vmatprep.mubr.f32.mxu0 0.0
    %850 = vmatmul.mubr.f32.gmra.mrb[0].mxu0 %v778
    %v851 = vpop.f32.mrb[0].mxu0
    %v852 = vadd.f32 %v771, %v851
    %v853 = vpop.f32.mrb[0].mxu0
    %854 = vdwg.mxu0
    %v856 = vsel %vm352, %v691, 0
    %v859 = vsel %vm352, %v692, 0
    %861 = vmatprep.subr.mxu0 0.0
    %862 = vmatpush1.msra.mxu0 %v673
    %863 = vmatprep.subr.mxu0 0.0
    %864 = vmatpush1.msra.mxu0 %v674
    %865 = vmatprep.subr.mxu0 0.0
    %866 = vmatpush1.msra.mxu0 %v675
    %867 = vmatprep.subr.mxu0 0.0
    %868 = vmatpush1.msra.mxu0 %v676
    %869 = vmatprep.subr.mxu0 0.0
    %870 = vmatpush1.msra.mxu0 %v677
    %871 = vmatprep.subr.mxu0 0.0
    %872 = vmatpush1.msra.mxu0 %v678
    %873 = vmatprep.subr.mxu0 0.0
    %874 = vmatpush1.msra.mxu0 %v679
    %875 = vmatprep.subr.mxu0 0.0
    %876 = vmatpush1.msra.mxu0 %v680
    %877 = vmatprep.subr.mxu0 0.0
    %878 = vmatpush1.msra.mxu0 0.0
    %879 = vmatprep.subr.mxu0 0.0
    %880 = vmatpush1.msra.mxu0 0.0
    %881 = vmatprep.subr.mxu0 0.0
    %882 = vmatpush1.msra.mxu0 0.0
    %883 = vmatprep.subr.mxu0 0.0
    %884 = vmatpush1.msra.mxu0 0.0
    %885 = vmatprep.subr.mxu0 0.0
    %886 = vmatpush1.msra.mxu0 0.0
    %887 = vmatprep.subr.mxu0 0.0
    %888 = vmatpush1.msra.mxu0 0.0
    %889 = vmatprep.subr.mxu0 0.0
    %890 = vmatpush1.msra.mxu0 0.0
    %891 = vmatprep.subr.mxu0 0.0
    %892 = vmatpush1.msra.mxu0 0.0
    %893 = vmatprep.subr.mxu0 0.0
    %894 = vmatpush1.msra.mxu0 0.0
    %895 = vmatprep.subr.mxu0 0.0
    %896 = vmatpush1.msra.mxu0 0.0
    %897 = vmatprep.subr.mxu0 0.0
    %898 = vmatpush1.msra.mxu0 0.0
    %899 = vmatprep.subr.mxu0 0.0
    %900 = vmatpush1.msra.mxu0 0.0
    %901 = vmatprep.subr.mxu0 0.0
    %902 = vmatpush1.msra.mxu0 0.0
    %903 = vmatprep.subr.mxu0 0.0
    %904 = vmatpush1.msra.mxu0 0.0
    %905 = vmatprep.subr.mxu0 0.0
    %906 = vmatpush1.msra.mxu0 0.0
    %907 = vmatprep.subr.mxu0 0.0
    %908 = vmatpush1.msra.mxu0 0.0
    %909 = vmatprep.subr.mxu0 0.0
    %910 = vmatpush1.msra.mxu0 0.0
    %911 = vmatprep.subr.mxu0 0.0
    %912 = vmatpush1.msra.mxu0 0.0
    %913 = vmatprep.subr.mxu0 0.0
    %914 = vmatpush1.msra.mxu0 0.0
    %915 = vmatprep.subr.mxu0 0.0
    %916 = vmatpush1.msra.mxu0 0.0
    %917 = vmatprep.subr.mxu0 0.0
    %918 = vmatpush1.msra.mxu0 0.0
    %919 = vmatprep.subr.mxu0 0.0
    %920 = vmatpush1.msra.mxu0 0.0
    %921 = vmatprep.subr.mxu0 0.0
    %922 = vmatpush1.msra.mxu0 0.0
    %923 = vmatprep.subr.mxu0 0.0
    %924 = vmatpush1.msra.mxu0 0.0
    %925 = vmatprep.mubr.f32.mxu0 0.0
    %926 = vmatmul.mubr.f32.gmra.mrb[0].mxu0 %v856
    %v927 = vpop.f32.mrb[0].mxu0
    %v928 = vadd.f32 0.0, %v927
    %v929 = vpop.f32.mrb[0].mxu0
    %930 = vmatprep.mubr.f32.mxu0 0.0
    %931 = vmatmul.mubr.f32.gmra.mrb[0].mxu0 %v859
    %v932 = vpop.f32.mrb[0].mxu0
    %v933 = vadd.f32 0.0, %v932
    %v934 = vpop.f32.mrb[0].mxu0
    %935 = vdwg.mxu0
    %v936 = vadd.f32 %v847, %v928
    %v937 = vadd.f32 %v852, %v933
    %v938 = vsel %vm352, %v936, 0.0
    %v939 = vsel %vm352, %v937, 0.0
    %v940 = vadd.f32 %v938, %v939
    %v941 = vrot.slane %v940, 4
    %v942 = vadd.f32 %v940, %v941
    %v943 = vrot.slane %v942, 2
    %v944 = vadd.f32 %v942, %v943
    %v945 = vrot.slane %v944, 1
    %v946 = vadd.f32 %v944, %v945
    %v947 = vmul.f32 %v936, %v936
    %v948 = vmul.f32 %v937, %v937
    %v949 = vsel %vm352, %v947, 0.0
    %v950 = vsel %vm352, %v948, 0.0
    %v951 = vadd.f32 %v949, %v950
    %v952 = vrot.slane %v951, 4
    %v953 = vadd.f32 %v951, %v952
    %v954 = vrot.slane %v953, 2
    %v955 = vadd.f32 %v953, %v954
    %v956 = vrot.slane %v955, 1
    %v957 = vadd.f32 %v955, %v956
    %vm958 = vcmp.lt.s32.totalorder %v46, 0
    %v959 = vsub.s32 0, %v46
    %v960 = vsel %vm958, %v959, %v46
    %v961 = vshrl.u32 %v960, 4
    %v962 = vand.u32 %v960, 15
    %v963 = vsub.s32 0, %v962
    %v964 = vsel %vm958, %v963, %v962
    %vm965 = vcmp.lt.s32.totalorder %v47, 0
    %v966 = vsub.s32 0, %v47
    %v967 = vsel %vm965, %v966, %v47
    %v968 = vshrl.u32 %v967, 4
    %v969 = vand.u32 %v967, 15
    %v970 = vsub.s32 0, %v969
    %v971 = vsel %vm965, %v970, %v969
    %vm972 = vcmp.lt.s32.totalorder %v373, 0
    %v973 = vsub.s32 0, %v373
    %v974 = vsel %vm972, %v973, %v373
    %v975 = vshrl.u32 %v974, 4
    %v976 = vand.u32 %v974, 15
    %v977 = vsub.s32 0, %v976
    %v978 = vsel %vm972, %v977, %v976
    %vm979 = vcmp.lt.s32.totalorder %v374, 0
    %v980 = vsub.s32 0, %v374
    %v981 = vsel %vm979, %v980, %v374
    %v982 = vshrl.u32 %v981, 4
    %v983 = vand.u32 %v981, 15
    %v984 = vsub.s32 0, %v983
    %v985 = vsel %vm979, %v984, %v983
    %vm986 = vcmp.lt.s32.totalorder %v375, 0
    %v987 = vsub.s32 0, %v375
    %v988 = vsel %vm986, %v987, %v375
    %v989 = vshrl.u32 %v988, 4
    %v990 = vand.u32 %v988, 15
    %v991 = vsub.s32 0, %v990
    %v992 = vsel %vm986, %v991, %v990
    %vm993 = vcmp.lt.s32.totalorder %v376, 0
    %v994 = vsub.s32 0, %v376
    %v995 = vsel %vm993, %v994, %v376
    %v996 = vshrl.u32 %v995, 4
    %v997 = vand.u32 %v995, 15
    %v998 = vsub.s32 0, %v997
    %v999 = vsel %vm993, %v998, %v997
    %vm1000 = vcmp.lt.s32.totalorder %v377, 0
    %v1001 = vsub.s32 0, %v377
    %v1002 = vsel %vm1000, %v1001, %v377
    %v1003 = vshrl.u32 %v1002, 4
    %v1004 = vand.u32 %v1002, 15
    %v1005 = vsub.s32 0, %v1004
    %v1006 = vsel %vm1000, %v1005, %v1004
    %vm1007 = vcmp.lt.s32.totalorder %v378, 0
    %v1008 = vsub.s32 0, %v378
    %v1009 = vsel %vm1007, %v1008, %v378
    %v1010 = vshrl.u32 %v1009, 4
    %v1011 = vand.u32 %v1009, 15
    %v1012 = vsub.s32 0, %v1011
    %v1013 = vsel %vm1007, %v1012, %v1011
    %vm1014 = vcmp.ne.s32.totalorder %v964, 0
    %vm1015 = vcmp.ne.s32.totalorder %v971, 0
    %vm1016 = vcmp.ne.s32.totalorder %v978, 0
    %vm1017 = vcmp.ne.s32.totalorder %v985, 0
    %vm1018 = vcmp.ne.s32.totalorder %v992, 0
    %vm1019 = vcmp.ne.s32.totalorder %v999, 0
    %vm1020 = vcmp.ne.s32.totalorder %v1006, 0
    %vm1021 = vcmp.ne.s32.totalorder %v1013, 0
    %vm1022 = vcmp.lt.s32.totalorder %v964, 0
    %vm1023 = vcmp.lt.s32.totalorder %v971, 0
    %vm1024 = vcmp.lt.s32.totalorder %v978, 0
    %vm1025 = vcmp.lt.s32.totalorder %v985, 0
    %vm1026 = vcmp.lt.s32.totalorder %v992, 0
    %vm1027 = vcmp.lt.s32.totalorder %v999, 0
    %vm1028 = vcmp.lt.s32.totalorder %v1006, 0
    %vm1029 = vcmp.lt.s32.totalorder %v1013, 0
    %vm1030 = vmand %vm1022, %vm1014
    %vm1031 = vmand %vm1023, %vm1015
    %vm1032 = vmand %vm1024, %vm1016
    %vm1033 = vmand %vm1025, %vm1017
    %vm1034 = vmand %vm1026, %vm1018
    %vm1035 = vmand %vm1027, %vm1019
    %vm1036 = vmand %vm1028, %vm1020
    %vm1037 = vmand %vm1029, %vm1021
    %v1038 = vadd.s32 %v964, 16
    %v1039 = vadd.s32 %v971, 16
    %v1040 = vadd.s32 %v978, 16
    %v1041 = vadd.s32 %v985, 16
    %v1042 = vadd.s32 %v992, 16
    %v1043 = vadd.s32 %v999, 16
    %v1044 = vadd.s32 %v1006, 16
    %v1045 = vadd.s32 %v1013, 16
    %v1046 = vsel %vm1030, %v1038, %v964
    %v1047 = vsel %vm1031, %v1039, %v971
    %v1048 = vsel %vm1032, %v1040, %v978
    %v1049 = vsel %vm1033, %v1041, %v985
    %v1050 = vsel %vm1034, %v1042, %v992
    %v1051 = vsel %vm1035, %v1043, %v999
    %v1052 = vsel %vm1036, %v1044, %v1006
    %v1053 = vsel %vm1037, %v1045, %v1013
    %vm1054 = vcmp.lt.s32.totalorder %v452, 0
    %v1055 = vsub.s32 0, %v452
    %v1056 = vsel %vm1054, %v1055, %v452
    %v1057 = vshrl.u32 %v1056, 4
    %v1058 = vand.u32 %v1056, 15
    %v1059 = vsub.s32 0, %v1058
    %v1060 = vsel %vm1054, %v1059, %v1058
    %vm1061 = vcmp.ne.s32.totalorder %v1060, 0
    %vm1062 = vcmp.lt.s32.totalorder %v1060, 0
    %vm1063 = vmand %vm1062, %vm1061
    %v1064 = vadd.s32 %v1060, 16
    %v1065 = vsel %vm1063, %v1064, %v1060
    %vm1066 = vcmp.eq.s32.totalorder %v1046, %v1065
    %vm1067 = vcmp.eq.s32.totalorder %v1047, %v1065
    %vm1068 = vcmp.eq.s32.totalorder %v1048, %v1065
    %vm1069 = vcmp.eq.s32.totalorder %v1049, %v1065
    %vm1070 = vcmp.eq.s32.totalorder %v1050, %v1065
    %vm1071 = vcmp.eq.s32.totalorder %v1051, %v1065
    %vm1072 = vcmp.eq.s32.totalorder %v1052, %v1065
    %vm1073 = vcmp.eq.s32.totalorder %v1053, %v1065
    %v1074 = vsel %vm1066, 1, 0
    %v1075 = vsel %vm1067, 1, 0
    %v1076 = vsel %vm1068, 1, 0
    %v1077 = vsel %vm1069, 1, 0
    %v1078 = vsel %vm1070, 1, 0
    %v1079 = vsel %vm1071, 1, 0
    %v1080 = vsel %vm1072, 1, 0
    %v1081 = vsel %vm1073, 1, 0
    %v1082 = vcvt.s32.f32 %v1074
    %v1083 = vcvt.s32.f32 %v1075
    %v1084 = vcvt.s32.f32 %v1076
    %v1085 = vcvt.s32.f32 %v1077
    %v1086 = vcvt.s32.f32 %v1078
    %v1087 = vcvt.s32.f32 %v1079
    %v1088 = vcvt.s32.f32 %v1080
    %v1089 = vcvt.s32.f32 %v1081
    %v1091 = vsel %vm352, %v946, 0
    %1093 = vmatprep.subr.mxu0 0.0
    %1094 = vmatpush1.msra.mxu0 %v1082
    %1095 = vmatprep.subr.mxu0 0.0
    %1096 = vmatpush1.msra.mxu0 %v1083
    %1097 = vmatprep.subr.mxu0 0.0
    %1098 = vmatpush1.msra.mxu0 %v1084
    %1099 = vmatprep.subr.mxu0 0.0
    %1100 = vmatpush1.msra.mxu0 %v1085
    %1101 = vmatprep.subr.mxu0 0.0
    %1102 = vmatpush1.msra.mxu0 %v1086
    %1103 = vmatprep.subr.mxu0 0.0
    %1104 = vmatpush1.msra.mxu0 %v1087
    %1105 = vmatprep.subr.mxu0 0.0
    %1106 = vmatpush1.msra.mxu0 %v1088
    %1107 = vmatprep.subr.mxu0 0.0
    %1108 = vmatpush1.msra.mxu0 %v1089
    %1109 = vmatprep.subr.mxu0 0.0
    %1110 = vmatpush1.msra.mxu0 0.0
    %1111 = vmatprep.subr.mxu0 0.0
    %1112 = vmatpush1.msra.mxu0 0.0
    %1113 = vmatprep.subr.mxu0 0.0
    %1114 = vmatpush1.msra.mxu0 0.0
    %1115 = vmatprep.subr.mxu0 0.0
    %1116 = vmatpush1.msra.mxu0 0.0
    %1117 = vmatprep.subr.mxu0 0.0
    %1118 = vmatpush1.msra.mxu0 0.0
    %1119 = vmatprep.subr.mxu0 0.0
    %1120 = vmatpush1.msra.mxu0 0.0
    %1121 = vmatprep.subr.mxu0 0.0
    %1122 = vmatpush1.msra.mxu0 0.0
    %1123 = vmatprep.subr.mxu0 0.0
    %1124 = vmatpush1.msra.mxu0 0.0
    %1125 = vmatprep.subr.mxu0 0.0
    %1126 = vmatpush1.msra.mxu0 0.0
    %1127 = vmatprep.subr.mxu0 0.0
    %1128 = vmatpush1.msra.mxu0 0.0
    %1129 = vmatprep.subr.mxu0 0.0
    %1130 = vmatpush1.msra.mxu0 0.0
    %1131 = vmatprep.subr.mxu0 0.0
    %1132 = vmatpush1.msra.mxu0 0.0
    %1133 = vmatprep.subr.mxu0 0.0
    %1134 = vmatpush1.msra.mxu0 0.0
    %1135 = vmatprep.subr.mxu0 0.0
    %1136 = vmatpush1.msra.mxu0 0.0
    %1137 = vmatprep.subr.mxu0 0.0
    %1138 = vmatpush1.msra.mxu0 0.0
    %1139 = vmatprep.subr.mxu0 0.0
    %1140 = vmatpush1.msra.mxu0 0.0
    %1141 = vmatprep.subr.mxu0 0.0
    %1142 = vmatpush1.msra.mxu0 0.0
    %1143 = vmatprep.subr.mxu0 0.0
    %1144 = vmatpush1.msra.mxu0 0.0
    %1145 = vmatprep.subr.mxu0 0.0
    %1146 = vmatpush1.msra.mxu0 0.0
    %1147 = vmatprep.subr.mxu0 0.0
    %1148 = vmatpush1.msra.mxu0 0.0
    %1149 = vmatprep.subr.mxu0 0.0
    %1150 = vmatpush1.msra.mxu0 0.0
    %1151 = vmatprep.subr.mxu0 0.0
    %1152 = vmatpush1.msra.mxu0 0.0
    %1153 = vmatprep.subr.mxu0 0.0
    %1154 = vmatpush1.msra.mxu0 0.0
    %1155 = vmatprep.subr.mxu0 0.0
    %1156 = vmatpush1.msra.mxu0 0.0
    %1157 = vmatprep.mubr.f32.mxu0 0.0
    %1158 = vmatmul.mubr.f32.gmra.mrb[0].mxu0 %v1091
    %v1159 = vpop.f32.mrb[0].mxu0
    %v1160 = vadd.f32 0.0, %v1159
    %v1161 = vpop.f32.mrb[0].mxu0
    %1162 = vdwg.mxu0
    %v1164 = vsel %vm352, %v957, 0
    %1166 = vmatprep.subr.mxu0 0.0
    %1167 = vmatpush1.msra.mxu0 %v1082
    %1168 = vmatprep.subr.mxu0 0.0
    %1169 = vmatpush1.msra.mxu0 %v1083
    %1170 = vmatprep.subr.mxu0 0.0
    %1171 = vmatpush1.msra.mxu0 %v1084
    %1172 = vmatprep.subr.mxu0 0.0
    %1173 = vmatpush1.msra.mxu0 %v1085
    %1174 = vmatprep.subr.mxu0 0.0
    %1175 = vmatpush1.msra.mxu0 %v1086
    %1176 = vmatprep.subr.mxu0 0.0
    %1177 = vmatpush1.msra.mxu0 %v1087
    %1178 = vmatprep.subr.mxu0 0.0
    %1179 = vmatpush1.msra.mxu0 %v1088
    %1180 = vmatprep.subr.mxu0 0.0
    %1181 = vmatpush1.msra.mxu0 %v1089
    %1182 = vmatprep.subr.mxu0 0.0
    %1183 = vmatpush1.msra.mxu0 0.0
    %1184 = vmatprep.subr.mxu0 0.0
    %1185 = vmatpush1.msra.mxu0 0.0
    %1186 = vmatprep.subr.mxu0 0.0
    %1187 = vmatpush1.msra.mxu0 0.0
    %1188 = vmatprep.subr.mxu0 0.0
    %1189 = vmatpush1.msra.mxu0 0.0
    %1190 = vmatprep.subr.mxu0 0.0
    %1191 = vmatpush1.msra.mxu0 0.0
    %1192 = vmatprep.subr.mxu0 0.0
    %1193 = vmatpush1.msra.mxu0 0.0
    %1194 = vmatprep.subr.mxu0 0.0
    %1195 = vmatpush1.msra.mxu0 0.0
    %1196 = vmatprep.subr.mxu0 0.0
    %1197 = vmatpush1.msra.mxu0 0.0
    %1198 = vmatprep.subr.mxu0 0.0
    %1199 = vmatpush1.msra.mxu0 0.0
    %1200 = vmatprep.subr.mxu0 0.0
    %1201 = vmatpush1.msra.mxu0 0.0
    %1202 = vmatprep.subr.mxu0 0.0
    %1203 = vmatpush1.msra.mxu0 0.0
    %1204 = vmatprep.subr.mxu0 0.0
    %1205 = vmatpush1.msra.mxu0 0.0
    %1206 = vmatprep.subr.mxu0 0.0
    %1207 = vmatpush1.msra.mxu0 0.0
    %1208 = vmatprep.subr.mxu0 0.0
    %1209 = vmatpush1.msra.mxu0 0.0
    %1210 = vmatprep.subr.mxu0 0.0
    %1211 = vmatpush1.msra.mxu0 0.0
    %1212 = vmatprep.subr.mxu0 0.0
    %1213 = vmatpush1.msra.mxu0 0.0
    %1214 = vmatprep.subr.mxu0 0.0
    %1215 = vmatpush1.msra.mxu0 0.0
    %1216 = vmatprep.subr.mxu0 0.0
    %1217 = vmatpush1.msra.mxu0 0.0
    %1218 = vmatprep.subr.mxu0 0.0
    %1219 = vmatpush1.msra.mxu0 0.0
    %1220 = vmatprep.subr.mxu0 0.0
    %1221 = vmatpush1.msra.mxu0 0.0
    %1222 = vmatprep.subr.mxu0 0.0
    %1223 = vmatpush1.msra.mxu0 0.0
    %1224 = vmatprep.subr.mxu0 0.0
    %1225 = vmatpush1.msra.mxu0 0.0
    %1226 = vmatprep.subr.mxu0 0.0
    %1227 = vmatpush1.msra.mxu0 0.0
    %1228 = vmatprep.subr.mxu0 0.0
    %1229 = vmatpush1.msra.mxu0 0.0
    %1230 = vmatprep.mubr.f32.mxu0 0.0
    %1231 = vmatmul.mubr.f32.gmra.mrb[0].mxu0 %v1164
    %v1232 = vpop.f32.mrb[0].mxu0
    %v1233 = vadd.f32 0.0, %v1232
    %v1234 = vpop.f32.mrb[0].mxu0
    %1235 = vdwg.mxu0
    %v1236 = vrcp.pop 64.0
    %v1237 = vmul.f32 %v1160, %v1236
    %v1238 = vmul.f32 %v1233, %v1236
    %v1239 = vmul.f32 %v1237, %v1237
    %v1240 = vsub.f32 %v1238, %v1239
    %v1241 = vmax.f32 %v1240, 0.0
    %v1242 = vadd.f32 %v1241, 1e-05
    %v1243 = vrsqrt.pop %v1242
    %v1244 = vlaneseq
    %v1245 = vshrl.u32 %v1244, 7
    %v1246 = vsub.s32 0, %v1245
    %v1247 = vrot.slane %v1237, %v1246
    %v1248 = vsub.f32 %v936, %v1247
    %v1249 = vsub.f32 %v937, %v1247
    %v1250 = vlaneseq
    %v1251 = vshrl.u32 %v1250, 7
    %v1252 = vsub.s32 0, %v1251
    %v1253 = vrot.slane %v1243, %v1252
    %v1254 = vmul.f32 %v1248, %v1253
    %v1255 = vmul.f32 %v1249, %v1253
    %v1256 = vmax.f32 %v1254, 0.0
    %v1257 = vmax.f32 %v1255, 0.0
    %v1258 = vld [vmem:[%s7] sm:$0xff]
    %v1259 = vld [vmem:[%s7 + $0x8] sm:$0xff]
    %v1260 = vld [vmem:[%s7 + $0x10] sm:$0xff]
    %v1261 = vld [vmem:[%s7 + $0x18] sm:$0xff]
    %v1262 = vld [vmem:[%s7 + $0x20] sm:$0xff]
    %v1263 = vld [vmem:[%s7 + $0x28] sm:$0xff]
    %v1264 = vld [vmem:[%s7 + $0x30] sm:$0xff]
    %v1265 = vld [vmem:[%s7 + $0x38] sm:$0xff]
    %v1266 = vld [vmem:[%s8] sm:$0xff]
    %v1267 = vld [vmem:[%s8 + $0x8] sm:$0xff]
    %v1268 = vld [vmem:[%s8 + $0x10] sm:$0xff]
    %v1269 = vld [vmem:[%s8 + $0x18] sm:$0xff]
    %v1270 = vld [vmem:[%s8 + $0x20] sm:$0xff]
    %v1271 = vld [vmem:[%s8 + $0x28] sm:$0xff]
    %v1272 = vld [vmem:[%s8 + $0x30] sm:$0xff]
    %v1273 = vld [vmem:[%s8 + $0x38] sm:$0xff]
    %v1274 = vld [vmem:[%s9] sm:$0xff]
    %v1275 = vld [vmem:[%s9 + $0x8] sm:$0xff]
    %v1276 = vld [vmem:[%s9 + $0x10] sm:$0xff]
    %v1277 = vld [vmem:[%s9 + $0x18] sm:$0xff]
    %v1278 = vld [vmem:[%s9 + $0x20] sm:$0xff]
    %v1279 = vld [vmem:[%s9 + $0x28] sm:$0xff]
    %v1280 = vld [vmem:[%s9 + $0x30] sm:$0xff]
    %v1281 = vld [vmem:[%s9 + $0x38] sm:$0xff]
    %v1282 = vrot.slane %v1256, 7
    %v1283 = vrot.slane %v1257, 7
    %v1284 = vsel %vm86, %v1282, %v1283
    %v1285 = vsel %vm86, %v1283, %v1282
    %v1286 = vsel %vm91, %v1285, 0.0
    %v1287 = vsel %vm92, %v1284, 0.0
    %v1288 = vrot.slane %v1256, 1
    %v1289 = vrot.slane %v1257, 1
    %v1290 = vsel %vm97, %v1288, %v1289
    %v1291 = vsel %vm97, %v1289, %v1288
    %v1292 = vsel %vm102, %v1290, 0.0
    %v1293 = vsel %vm103, %v1291, 0.0
    %v1295 = vsel %vm352, %v1286, 0
    %v1298 = vsel %vm352, %v1287, 0
    %1300 = vmatprep.subr.mxu0 0.0
    %1301 = vmatpush1.msra.mxu0 %v1266
    %1302 = vmatprep.subr.mxu0 0.0
    %1303 = vmatpush1.msra.mxu0 %v1267
    %1304 = vmatprep.subr.mxu0 0.0
    %1305 = vmatpush1.msra.mxu0 %v1268
    %1306 = vmatprep.subr.mxu0 0.0
    %1307 = vmatpush1.msra.mxu0 %v1269
    %1308 = vmatprep.subr.mxu0 0.0
    %1309 = vmatpush1.msra.mxu0 %v1270
    %1310 = vmatprep.subr.mxu0 0.0
    %1311 = vmatpush1.msra.mxu0 %v1271
    %1312 = vmatprep.subr.mxu0 0.0
    %1313 = vmatpush1.msra.mxu0 %v1272
    %1314 = vmatprep.subr.mxu0 0.0
    %1315 = vmatpush1.msra.mxu0 %v1273
    %1316 = vmatprep.subr.mxu0 0.0
    %1317 = vmatpush1.msra.mxu0 0.0
    %1318 = vmatprep.subr.mxu0 0.0
    %1319 = vmatpush1.msra.mxu0 0.0
    %1320 = vmatprep.subr.mxu0 0.0
    %1321 = vmatpush1.msra.mxu0 0.0
    %1322 = vmatprep.subr.mxu0 0.0
    %1323 = vmatpush1.msra.mxu0 0.0
    %1324 = vmatprep.subr.mxu0 0.0
    %1325 = vmatpush1.msra.mxu0 0.0
    %1326 = vmatprep.subr.mxu0 0.0
    %1327 = vmatpush1.msra.mxu0 0.0
    %1328 = vmatprep.subr.mxu0 0.0
    %1329 = vmatpush1.msra.mxu0 0.0
    %1330 = vmatprep.subr.mxu0 0.0
    %1331 = vmatpush1.msra.mxu0 0.0
    %1332 = vmatprep.subr.mxu0 0.0
    %1333 = vmatpush1.msra.mxu0 0.0
    %1334 = vmatprep.subr.mxu0 0.0
    %1335 = vmatpush1.msra.mxu0 0.0
    %1336 = vmatprep.subr.mxu0 0.0
    %1337 = vmatpush1.msra.mxu0 0.0
    %1338 = vmatprep.subr.mxu0 0.0
    %1339 = vmatpush1.msra.mxu0 0.0
    %1340 = vmatprep.subr.mxu0 0.0
    %1341 = vmatpush1.msra.mxu0 0.0
    %1342 = vmatprep.subr.mxu0 0.0
    %1343 = vmatpush1.msra.mxu0 0.0
    %1344 = vmatprep.subr.mxu0 0.0
    %1345 = vmatpush1.msra.mxu0 0.0
    %1346 = vmatprep.subr.mxu0 0.0
    %1347 = vmatpush1.msra.mxu0 0.0
    %1348 = vmatprep.subr.mxu0 0.0
    %1349 = vmatpush1.msra.mxu0 0.0
    %1350 = vmatprep.subr.mxu0 0.0
    %1351 = vmatpush1.msra.mxu0 0.0
    %1352 = vmatprep.subr.mxu0 0.0
    %1353 = vmatpush1.msra.mxu0 0.0
    %1354 = vmatprep.subr.mxu0 0.0
    %1355 = vmatpush1.msra.mxu0 0.0
    %1356 = vmatprep.subr.mxu0 0.0
    %1357 = vmatpush1.msra.mxu0 0.0
    %1358 = vmatprep.subr.mxu0 0.0
    %1359 = vmatpush1.msra.mxu0 0.0
    %1360 = vmatprep.subr.mxu0 0.0
    %1361 = vmatpush1.msra.mxu0 0.0
    %1362 = vmatprep.subr.mxu0 0.0
    %1363 = vmatpush1.msra.mxu0 0.0
    %1364 = vmatprep.mubr.f32.mxu0 0.0
    %1365 = vmatmul.mubr.f32.gmra.mrb[0].mxu0 %v1295
    %v1366 = vpop.f32.mrb[0].mxu0
    %v1367 = vadd.f32 0.0, %v1366
    %v1368 = vpop.f32.mrb[0].mxu0
    %1369 = vmatprep.mubr.f32.mxu0 0.0
    %1370 = vmatmul.mubr.f32.gmra.mrb[0].mxu0 %v1298
    %v1371 = vpop.f32.mrb[0].mxu0
    %v1372 = vadd.f32 0.0, %v1371
    %v1373 = vpop.f32.mrb[0].mxu0
    %1374 = vdwg.mxu0
    %v1376 = vsel %vm352, %v1256, 0
    %v1379 = vsel %vm352, %v1257, 0
    %1381 = vmatprep.subr.mxu0 0.0
    %1382 = vmatpush1.msra.mxu0 %v1258
    %1383 = vmatprep.subr.mxu0 0.0
    %1384 = vmatpush1.msra.mxu0 %v1259
    %1385 = vmatprep.subr.mxu0 0.0
    %1386 = vmatpush1.msra.mxu0 %v1260
    %1387 = vmatprep.subr.mxu0 0.0
    %1388 = vmatpush1.msra.mxu0 %v1261
    %1389 = vmatprep.subr.mxu0 0.0
    %1390 = vmatpush1.msra.mxu0 %v1262
    %1391 = vmatprep.subr.mxu0 0.0
    %1392 = vmatpush1.msra.mxu0 %v1263
    %1393 = vmatprep.subr.mxu0 0.0
    %1394 = vmatpush1.msra.mxu0 %v1264
    %1395 = vmatprep.subr.mxu0 0.0
    %1396 = vmatpush1.msra.mxu0 %v1265
    %1397 = vmatprep.subr.mxu0 0.0
    %1398 = vmatpush1.msra.mxu0 0.0
    %1399 = vmatprep.subr.mxu0 0.0
    %1400 = vmatpush1.msra.mxu0 0.0
    %1401 = vmatprep.subr.mxu0 0.0
    %1402 = vmatpush1.msra.mxu0 0.0
    %1403 = vmatprep.subr.mxu0 0.0
    %1404 = vmatpush1.msra.mxu0 0.0
    %1405 = vmatprep.subr.mxu0 0.0
    %1406 = vmatpush1.msra.mxu0 0.0
    %1407 = vmatprep.subr.mxu0 0.0
    %1408 = vmatpush1.msra.mxu0 0.0
    %1409 = vmatprep.subr.mxu0 0.0
    %1410 = vmatpush1.msra.mxu0 0.0
    %1411 = vmatprep.subr.mxu0 0.0
    %1412 = vmatpush1.msra.mxu0 0.0
    %1413 = vmatprep.subr.mxu0 0.0
    %1414 = vmatpush1.msra.mxu0 0.0
    %1415 = vmatprep.subr.mxu0 0.0
    %1416 = vmatpush1.msra.mxu0 0.0
    %1417 = vmatprep.subr.mxu0 0.0
    %1418 = vmatpush1.msra.mxu0 0.0
    %1419 = vmatprep.subr.mxu0 0.0
    %1420 = vmatpush1.msra.mxu0 0.0
    %1421 = vmatprep.subr.mxu0 0.0
    %1422 = vmatpush1.msra.mxu0 0.0
    %1423 = vmatprep.subr.mxu0 0.0
    %1424 = vmatpush1.msra.mxu0 0.0
    %1425 = vmatprep.subr.mxu0 0.0
    %1426 = vmatpush1.msra.mxu0 0.0
    %1427 = vmatprep.subr.mxu0 0.0
    %1428 = vmatpush1.msra.mxu0 0.0
    %1429 = vmatprep.subr.mxu0 0.0
    %1430 = vmatpush1.msra.mxu0 0.0
    %1431 = vmatprep.subr.mxu0 0.0
    %1432 = vmatpush1.msra.mxu0 0.0
    %1433 = vmatprep.subr.mxu0 0.0
    %1434 = vmatpush1.msra.mxu0 0.0
    %1435 = vmatprep.subr.mxu0 0.0
    %1436 = vmatpush1.msra.mxu0 0.0
    %1437 = vmatprep.subr.mxu0 0.0
    %1438 = vmatpush1.msra.mxu0 0.0
    %1439 = vmatprep.subr.mxu0 0.0
    %1440 = vmatpush1.msra.mxu0 0.0
    %1441 = vmatprep.subr.mxu0 0.0
    %1442 = vmatpush1.msra.mxu0 0.0
    %1443 = vmatprep.subr.mxu0 0.0
    %1444 = vmatpush1.msra.mxu0 0.0
    %1445 = vmatprep.mubr.f32.mxu0 0.0
    %1446 = vmatmul.mubr.f32.gmra.mrb[0].mxu0 %v1376
    %v1447 = vpop.f32.mrb[0].mxu0
    %v1448 = vadd.f32 %v1367, %v1447
    %v1449 = vpop.f32.mrb[0].mxu0
    %1450 = vmatprep.mubr.f32.mxu0 0.0
    %1451 = vmatmul.mubr.f32.gmra.mrb[0].mxu0 %v1379
    %v1452 = vpop.f32.mrb[0].mxu0
    %v1453 = vadd.f32 %v1372, %v1452
    %v1454 = vpop.f32.mrb[0].mxu0
    %1455 = vdwg.mxu0
    %v1457 = vsel %vm352, %v1292, 0
    %v1460 = vsel %vm352, %v1293, 0
    %1462 = vmatprep.subr.mxu0 0.0
    %1463 = vmatpush1.msra.mxu0 %v1274
    %1464 = vmatprep.subr.mxu0 0.0
    %1465 = vmatpush1.msra.mxu0 %v1275
    %1466 = vmatprep.subr.mxu0 0.0
    %1467 = vmatpush1.msra.mxu0 %v1276
    %1468 = vmatprep.subr.mxu0 0.0
    %1469 = vmatpush1.msra.mxu0 %v1277
    %1470 = vmatprep.subr.mxu0 0.0
    %1471 = vmatpush1.msra.mxu0 %v1278
    %1472 = vmatprep.subr.mxu0 0.0
    %1473 = vmatpush1.msra.mxu0 %v1279
    %1474 = vmatprep.subr.mxu0 0.0
    %1475 = vmatpush1.msra.mxu0 %v1280
    %1476 = vmatprep.subr.mxu0 0.0
    %1477 = vmatpush1.msra.mxu0 %v1281
    %1478 = vmatprep.subr.mxu0 0.0
    %1479 = vmatpush1.msra.mxu0 0.0
    %1480 = vmatprep.subr.mxu0 0.0
    %1481 = vmatpush1.msra.mxu0 0.0
    %1482 = vmatprep.subr.mxu0 0.0
    %1483 = vmatpush1.msra.mxu0 0.0
    %1484 = vmatprep.subr.mxu0 0.0
    %1485 = vmatpush1.msra.mxu0 0.0
    %1486 = vmatprep.subr.mxu0 0.0
    %1487 = vmatpush1.msra.mxu0 0.0
    %1488 = vmatprep.subr.mxu0 0.0
    %1489 = vmatpush1.msra.mxu0 0.0
    %1490 = vmatprep.subr.mxu0 0.0
    %1491 = vmatpush1.msra.mxu0 0.0
    %1492 = vmatprep.subr.mxu0 0.0
    %1493 = vmatpush1.msra.mxu0 0.0
    %1494 = vmatprep.subr.mxu0 0.0
    %1495 = vmatpush1.msra.mxu0 0.0
    %1496 = vmatprep.subr.mxu0 0.0
    %1497 = vmatpush1.msra.mxu0 0.0
    %1498 = vmatprep.subr.mxu0 0.0
    %1499 = vmatpush1.msra.mxu0 0.0
    %1500 = vmatprep.subr.mxu0 0.0
    %1501 = vmatpush1.msra.mxu0 0.0
    %1502 = vmatprep.subr.mxu0 0.0
    %1503 = vmatpush1.msra.mxu0 0.0
    %1504 = vmatprep.subr.mxu0 0.0
    %1505 = vmatpush1.msra.mxu0 0.0
    %1506 = vmatprep.subr.mxu0 0.0
    %1507 = vmatpush1.msra.mxu0 0.0
    %1508 = vmatprep.subr.mxu0 0.0
    %1509 = vmatpush1.msra.mxu0 0.0
    %1510 = vmatprep.subr.mxu0 0.0
    %1511 = vmatpush1.msra.mxu0 0.0
    %1512 = vmatprep.subr.mxu0 0.0
    %1513 = vmatpush1.msra.mxu0 0.0
    %1514 = vmatprep.subr.mxu0 0.0
    %1515 = vmatpush1.msra.mxu0 0.0
    %1516 = vmatprep.subr.mxu0 0.0
    %1517 = vmatpush1.msra.mxu0 0.0
    %1518 = vmatprep.subr.mxu0 0.0
    %1519 = vmatpush1.msra.mxu0 0.0
    %1520 = vmatprep.subr.mxu0 0.0
    %1521 = vmatpush1.msra.mxu0 0.0
    %1522 = vmatprep.subr.mxu0 0.0
    %1523 = vmatpush1.msra.mxu0 0.0
    %1524 = vmatprep.subr.mxu0 0.0
    %1525 = vmatpush1.msra.mxu0 0.0
    %1526 = vmatprep.mubr.f32.mxu0 0.0
    %1527 = vmatmul.mubr.f32.gmra.mrb[0].mxu0 %v1457
    %v1528 = vpop.f32.mrb[0].mxu0
    %v1529 = vadd.f32 0.0, %v1528
    %v1530 = vpop.f32.mrb[0].mxu0
    %1531 = vmatprep.mubr.f32.mxu0 0.0
    %1532 = vmatmul.mubr.f32.gmra.mrb[0].mxu0 %v1460
    %v1533 = vpop.f32.mrb[0].mxu0
    %v1534 = vadd.f32 0.0, %v1533
    %v1535 = vpop.f32.mrb[0].mxu0
    %1536 = vdwg.mxu0
    %v1537 = vadd.f32 %v1448, %v1529
    %v1538 = vadd.f32 %v1453, %v1534
    %v1539 = vsel %vm352, %v1537, 0.0
    %v1540 = vsel %vm352, %v1538, 0.0
    %v1541 = vadd.f32 %v1539, %v1540
    %v1542 = vrot.slane %v1541, 4
    %v1543 = vadd.f32 %v1541, %v1542
    %v1544 = vrot.slane %v1543, 2
    %v1545 = vadd.f32 %v1543, %v1544
    %v1546 = vrot.slane %v1545, 1
    %v1547 = vadd.f32 %v1545, %v1546
    %v1548 = vmul.f32 %v1537, %v1537
    %v1549 = vmul.f32 %v1538, %v1538
    %v1550 = vsel %vm352, %v1548, 0.0
    %v1551 = vsel %vm352, %v1549, 0.0
    %v1552 = vadd.f32 %v1550, %v1551
    %v1553 = vrot.slane %v1552, 4
    %v1554 = vadd.f32 %v1552, %v1553
    %v1555 = vrot.slane %v1554, 2
    %v1556 = vadd.f32 %v1554, %v1555
    %v1557 = vrot.slane %v1556, 1
    %v1558 = vadd.f32 %v1556, %v1557
    %vm1559 = vcmp.lt.s32.totalorder %v46, 0
    %v1560 = vsub.s32 0, %v46
    %v1561 = vsel %vm1559, %v1560, %v46
    %v1562 = vshrl.u32 %v1561, 5
    %v1563 = vand.u32 %v1561, 31
    %v1564 = vsub.s32 0, %v1563
    %v1565 = vsel %vm1559, %v1564, %v1563
    %vm1566 = vcmp.lt.s32.totalorder %v47, 0
    %v1567 = vsub.s32 0, %v47
    %v1568 = vsel %vm1566, %v1567, %v47
    %v1569 = vshrl.u32 %v1568, 5
    %v1570 = vand.u32 %v1568, 31
    %v1571 = vsub.s32 0, %v1570
    %v1572 = vsel %vm1566, %v1571, %v1570
    %vm1573 = vcmp.lt.s32.totalorder %v373, 0
    %v1574 = vsub.s32 0, %v373
    %v1575 = vsel %vm1573, %v1574, %v373
    %v1576 = vshrl.u32 %v1575, 5
    %v1577 = vand.u32 %v1575, 31
    %v1578 = vsub.s32 0, %v1577
    %v1579 = vsel %vm1573, %v1578, %v1577
    %vm1580 = vcmp.lt.s32.totalorder %v374, 0
    %v1581 = vsub.s32 0, %v374
    %v1582 = vsel %vm1580, %v1581, %v374
    %v1583 = vshrl.u32 %v1582, 5
    %v1584 = vand.u32 %v1582, 31
    %v1585 = vsub.s32 0, %v1584
    %v1586 = vsel %vm1580, %v1585, %v1584
    %vm1587 = vcmp.lt.s32.totalorder %v375, 0
    %v1588 = vsub.s32 0, %v375
    %v1589 = vsel %vm1587, %v1588, %v375
    %v1590 = vshrl.u32 %v1589, 5
    %v1591 = vand.u32 %v1589, 31
    %v1592 = vsub.s32 0, %v1591
    %v1593 = vsel %vm1587, %v1592, %v1591
    %vm1594 = vcmp.lt.s32.totalorder %v376, 0
    %v1595 = vsub.s32 0, %v376
    %v1596 = vsel %vm1594, %v1595, %v376
    %v1597 = vshrl.u32 %v1596, 5
    %v1598 = vand.u32 %v1596, 31
    %v1599 = vsub.s32 0, %v1598
    %v1600 = vsel %vm1594, %v1599, %v1598
    %vm1601 = vcmp.lt.s32.totalorder %v377, 0
    %v1602 = vsub.s32 0, %v377
    %v1603 = vsel %vm1601, %v1602, %v377
    %v1604 = vshrl.u32 %v1603, 5
    %v1605 = vand.u32 %v1603, 31
    %v1606 = vsub.s32 0, %v1605
    %v1607 = vsel %vm1601, %v1606, %v1605
    %vm1608 = vcmp.lt.s32.totalorder %v378, 0
    %v1609 = vsub.s32 0, %v378
    %v1610 = vsel %vm1608, %v1609, %v378
    %v1611 = vshrl.u32 %v1610, 5
    %v1612 = vand.u32 %v1610, 31
    %v1613 = vsub.s32 0, %v1612
    %v1614 = vsel %vm1608, %v1613, %v1612
    %vm1615 = vcmp.ne.s32.totalorder %v1565, 0
    %vm1616 = vcmp.ne.s32.totalorder %v1572, 0
    %vm1617 = vcmp.ne.s32.totalorder %v1579, 0
    %vm1618 = vcmp.ne.s32.totalorder %v1586, 0
    %vm1619 = vcmp.ne.s32.totalorder %v1593, 0
    %vm1620 = vcmp.ne.s32.totalorder %v1600, 0
    %vm1621 = vcmp.ne.s32.totalorder %v1607, 0
    %vm1622 = vcmp.ne.s32.totalorder %v1614, 0
    %vm1623 = vcmp.lt.s32.totalorder %v1565, 0
    %vm1624 = vcmp.lt.s32.totalorder %v1572, 0
    %vm1625 = vcmp.lt.s32.totalorder %v1579, 0
    %vm1626 = vcmp.lt.s32.totalorder %v1586, 0
    %vm1627 = vcmp.lt.s32.totalorder %v1593, 0
    %vm1628 = vcmp.lt.s32.totalorder %v1600, 0
    %vm1629 = vcmp.lt.s32.totalorder %v1607, 0
    %vm1630 = vcmp.lt.s32.totalorder %v1614, 0
    %vm1631 = vmand %vm1623, %vm1615
    %vm1632 = vmand %vm1624, %vm1616
    %vm1633 = vmand %vm1625, %vm1617
    %vm1634 = vmand %vm1626, %vm1618
    %vm1635 = vmand %vm1627, %vm1619
    %vm1636 = vmand %vm1628, %vm1620
    %vm1637 = vmand %vm1629, %vm1621
    %vm1638 = vmand %vm1630, %vm1622
    %v1639 = vadd.s32 %v1565, 32
    %v1640 = vadd.s32 %v1572, 32
    %v1641 = vadd.s32 %v1579, 32
    %v1642 = vadd.s32 %v1586, 32
    %v1643 = vadd.s32 %v1593, 32
    %v1644 = vadd.s32 %v1600, 32
    %v1645 = vadd.s32 %v1607, 32
    %v1646 = vadd.s32 %v1614, 32
    %v1647 = vsel %vm1631, %v1639, %v1565
    %v1648 = vsel %vm1632, %v1640, %v1572
    %v1649 = vsel %vm1633, %v1641, %v1579
    %v1650 = vsel %vm1634, %v1642, %v1586
    %v1651 = vsel %vm1635, %v1643, %v1593
    %v1652 = vsel %vm1636, %v1644, %v1600
    %v1653 = vsel %vm1637, %v1645, %v1607
    %v1654 = vsel %vm1638, %v1646, %v1614
    %vm1655 = vcmp.lt.s32.totalorder %v452, 0
    %v1656 = vsub.s32 0, %v452
    %v1657 = vsel %vm1655, %v1656, %v452
    %v1658 = vshrl.u32 %v1657, 5
    %v1659 = vand.u32 %v1657, 31
    %v1660 = vsub.s32 0, %v1659
    %v1661 = vsel %vm1655, %v1660, %v1659
    %vm1662 = vcmp.ne.s32.totalorder %v1661, 0
    %vm1663 = vcmp.lt.s32.totalorder %v1661, 0
    %vm1664 = vmand %vm1663, %vm1662
    %v1665 = vadd.s32 %v1661, 32
    %v1666 = vsel %vm1664, %v1665, %v1661
    %vm1667 = vcmp.eq.s32.totalorder %v1647, %v1666
    %vm1668 = vcmp.eq.s32.totalorder %v1648, %v1666
    %vm1669 = vcmp.eq.s32.totalorder %v1649, %v1666
    %vm1670 = vcmp.eq.s32.totalorder %v1650, %v1666
    %vm1671 = vcmp.eq.s32.totalorder %v1651, %v1666
    %vm1672 = vcmp.eq.s32.totalorder %v1652, %v1666
    %vm1673 = vcmp.eq.s32.totalorder %v1653, %v1666
    %vm1674 = vcmp.eq.s32.totalorder %v1654, %v1666
    %v1675 = vsel %vm1667, 1, 0
    %v1676 = vsel %vm1668, 1, 0
    %v1677 = vsel %vm1669, 1, 0
    %v1678 = vsel %vm1670, 1, 0
    %v1679 = vsel %vm1671, 1, 0
    %v1680 = vsel %vm1672, 1, 0
    %v1681 = vsel %vm1673, 1, 0
    %v1682 = vsel %vm1674, 1, 0
    %v1683 = vcvt.s32.f32 %v1675
    %v1684 = vcvt.s32.f32 %v1676
    %v1685 = vcvt.s32.f32 %v1677
    %v1686 = vcvt.s32.f32 %v1678
    %v1687 = vcvt.s32.f32 %v1679
    %v1688 = vcvt.s32.f32 %v1680
    %v1689 = vcvt.s32.f32 %v1681
    %v1690 = vcvt.s32.f32 %v1682
    %v1692 = vsel %vm352, %v1547, 0
    %1694 = vmatprep.subr.mxu0 0.0
    %1695 = vmatpush1.msra.mxu0 %v1683
    %1696 = vmatprep.subr.mxu0 0.0
    %1697 = vmatpush1.msra.mxu0 %v1684
    %1698 = vmatprep.subr.mxu0 0.0
    %1699 = vmatpush1.msra.mxu0 %v1685
    %1700 = vmatprep.subr.mxu0 0.0
    %1701 = vmatpush1.msra.mxu0 %v1686
    %1702 = vmatprep.subr.mxu0 0.0
    %1703 = vmatpush1.msra.mxu0 %v1687
    %1704 = vmatprep.subr.mxu0 0.0
    %1705 = vmatpush1.msra.mxu0 %v1688
    %1706 = vmatprep.subr.mxu0 0.0
    %1707 = vmatpush1.msra.mxu0 %v1689
    %1708 = vmatprep.subr.mxu0 0.0
    %1709 = vmatpush1.msra.mxu0 %v1690
    %1710 = vmatprep.subr.mxu0 0.0
    %1711 = vmatpush1.msra.mxu0 0.0
    %1712 = vmatprep.subr.mxu0 0.0
    %1713 = vmatpush1.msra.mxu0 0.0
    %1714 = vmatprep.subr.mxu0 0.0
    %1715 = vmatpush1.msra.mxu0 0.0
    %1716 = vmatprep.subr.mxu0 0.0
    %1717 = vmatpush1.msra.mxu0 0.0
    %1718 = vmatprep.subr.mxu0 0.0
    %1719 = vmatpush1.msra.mxu0 0.0
    %1720 = vmatprep.subr.mxu0 0.0
    %1721 = vmatpush1.msra.mxu0 0.0
    %1722 = vmatprep.subr.mxu0 0.0
    %1723 = vmatpush1.msra.mxu0 0.0
    %1724 = vmatprep.subr.mxu0 0.0
    %1725 = vmatpush1.msra.mxu0 0.0
    %1726 = vmatprep.subr.mxu0 0.0
    %1727 = vmatpush1.msra.mxu0 0.0
    %1728 = vmatprep.subr.mxu0 0.0
    %1729 = vmatpush1.msra.mxu0 0.0
    %1730 = vmatprep.subr.mxu0 0.0
    %1731 = vmatpush1.msra.mxu0 0.0
    %1732 = vmatprep.subr.mxu0 0.0
    %1733 = vmatpush1.msra.mxu0 0.0
    %1734 = vmatprep.subr.mxu0 0.0
    %1735 = vmatpush1.msra.mxu0 0.0
    %1736 = vmatprep.subr.mxu0 0.0
    %1737 = vmatpush1.msra.mxu0 0.0
    %1738 = vmatprep.subr.mxu0 0.0
    %1739 = vmatpush1.msra.mxu0 0.0
    %1740 = vmatprep.subr.mxu0 0.0
    %1741 = vmatpush1.msra.mxu0 0.0
    %1742 = vmatprep.subr.mxu0 0.0
    %1743 = vmatpush1.msra.mxu0 0.0
    %1744 = vmatprep.subr.mxu0 0.0
    %1745 = vmatpush1.msra.mxu0 0.0
    %1746 = vmatprep.subr.mxu0 0.0
    %1747 = vmatpush1.msra.mxu0 0.0
    %1748 = vmatprep.subr.mxu0 0.0
    %1749 = vmatpush1.msra.mxu0 0.0
    %1750 = vmatprep.subr.mxu0 0.0
    %1751 = vmatpush1.msra.mxu0 0.0
    %1752 = vmatprep.subr.mxu0 0.0
    %1753 = vmatpush1.msra.mxu0 0.0
    %1754 = vmatprep.subr.mxu0 0.0
    %1755 = vmatpush1.msra.mxu0 0.0
    %1756 = vmatprep.subr.mxu0 0.0
    %1757 = vmatpush1.msra.mxu0 0.0
    %1758 = vmatprep.mubr.f32.mxu0 0.0
    %1759 = vmatmul.mubr.f32.gmra.mrb[0].mxu0 %v1692
    %v1760 = vpop.f32.mrb[0].mxu0
    %v1761 = vadd.f32 0.0, %v1760
    %v1762 = vpop.f32.mrb[0].mxu0
    %1763 = vdwg.mxu0
    %v1765 = vsel %vm352, %v1558, 0
    %1767 = vmatprep.subr.mxu0 0.0
    %1768 = vmatpush1.msra.mxu0 %v1683
    %1769 = vmatprep.subr.mxu0 0.0
    %1770 = vmatpush1.msra.mxu0 %v1684
    %1771 = vmatprep.subr.mxu0 0.0
    %1772 = vmatpush1.msra.mxu0 %v1685
    %1773 = vmatprep.subr.mxu0 0.0
    %1774 = vmatpush1.msra.mxu0 %v1686
    %1775 = vmatprep.subr.mxu0 0.0
    %1776 = vmatpush1.msra.mxu0 %v1687
    %1777 = vmatprep.subr.mxu0 0.0
    %1778 = vmatpush1.msra.mxu0 %v1688
    %1779 = vmatprep.subr.mxu0 0.0
    %1780 = vmatpush1.msra.mxu0 %v1689
    %1781 = vmatprep.subr.mxu0 0.0
    %1782 = vmatpush1.msra.mxu0 %v1690
    %1783 = vmatprep.subr.mxu0 0.0
    %1784 = vmatpush1.msra.mxu0 0.0
    %1785 = vmatprep.subr.mxu0 0.0
    %1786 = vmatpush1.msra.mxu0 0.0
    %1787 = vmatprep.subr.mxu0 0.0
    %1788 = vmatpush1.msra.mxu0 0.0
    %1789 = vmatprep.subr.mxu0 0.0
    %1790 = vmatpush1.msra.mxu0 0.0
    %1791 = vmatprep.subr.mxu0 0.0
    %1792 = vmatpush1.msra.mxu0 0.0
    %1793 = vmatprep.subr.mxu0 0.0
    %1794 = vmatpush1.msra.mxu0 0.0
    %1795 = vmatprep.subr.mxu0 0.0
    %1796 = vmatpush1.msra.mxu0 0.0
    %1797 = vmatprep.subr.mxu0 0.0
    %1798 = vmatpush1.msra.mxu0 0.0
    %1799 = vmatprep.subr.mxu0 0.0
    %1800 = vmatpush1.msra.mxu0 0.0
    %1801 = vmatprep.subr.mxu0 0.0
    %1802 = vmatpush1.msra.mxu0 0.0
    %1803 = vmatprep.subr.mxu0 0.0
    %1804 = vmatpush1.msra.mxu0 0.0
    %1805 = vmatprep.subr.mxu0 0.0
    %1806 = vmatpush1.msra.mxu0 0.0
    %1807 = vmatprep.subr.mxu0 0.0
    %1808 = vmatpush1.msra.mxu0 0.0
    %1809 = vmatprep.subr.mxu0 0.0
    %1810 = vmatpush1.msra.mxu0 0.0
    %1811 = vmatprep.subr.mxu0 0.0
    %1812 = vmatpush1.msra.mxu0 0.0
    %1813 = vmatprep.subr.mxu0 0.0
    %1814 = vmatpush1.msra.mxu0 0.0
    %1815 = vmatprep.subr.mxu0 0.0
    %1816 = vmatpush1.msra.mxu0 0.0
    %1817 = vmatprep.subr.mxu0 0.0
    %1818 = vmatpush1.msra.mxu0 0.0
    %1819 = vmatprep.subr.mxu0 0.0
    %1820 = vmatpush1.msra.mxu0 0.0
    %1821 = vmatprep.subr.mxu0 0.0
    %1822 = vmatpush1.msra.mxu0 0.0
    %1823 = vmatprep.subr.mxu0 0.0
    %1824 = vmatpush1.msra.mxu0 0.0
    %1825 = vmatprep.subr.mxu0 0.0
    %1826 = vmatpush1.msra.mxu0 0.0
    %1827 = vmatprep.subr.mxu0 0.0
    %1828 = vmatpush1.msra.mxu0 0.0
    %1829 = vmatprep.subr.mxu0 0.0
    %1830 = vmatpush1.msra.mxu0 0.0
    %1831 = vmatprep.mubr.f32.mxu0 0.0
    %1832 = vmatmul.mubr.f32.gmra.mrb[0].mxu0 %v1765
    %v1833 = vpop.f32.mrb[0].mxu0
    %v1834 = vadd.f32 0.0, %v1833
    %v1835 = vpop.f32.mrb[0].mxu0
    %1836 = vdwg.mxu0
    %v1837 = vrcp.pop 32.0
    %v1838 = vmul.f32 %v1761, %v1837
    %v1839 = vmul.f32 %v1834, %v1837
    %v1840 = vmul.f32 %v1838, %v1838
    %v1841 = vsub.f32 %v1839, %v1840
    %v1842 = vmax.f32 %v1841, 0.0
    %v1843 = vadd.f32 %v1842, 1e-05
    %v1844 = vrsqrt.pop %v1843
    %v1845 = vlaneseq
    %v1846 = vshrl.u32 %v1845, 7
    %v1847 = vsub.s32 0, %v1846
    %v1848 = vrot.slane %v1838, %v1847
    %v1849 = vsub.f32 %v1537, %v1848
    %v1850 = vsub.f32 %v1538, %v1848
    %v1851 = vlaneseq
    %v1852 = vshrl.u32 %v1851, 7
    %v1853 = vsub.s32 0, %v1852
    %v1854 = vrot.slane %v1844, %v1853
    %v1855 = vmul.f32 %v1849, %v1854
    %v1856 = vmul.f32 %v1850, %v1854
    %v1857 = vmax.f32 %v1855, 0.0
    %v1858 = vmax.f32 %v1856, 0.0
    %v1859 = vld [vmem:[%s10] sm:$0xff]
    %v1860 = vld [vmem:[%s10 + $0x8] sm:$0xff]
    %v1861 = vld [vmem:[%s10 + $0x10] sm:$0xff]
    %v1862 = vld [vmem:[%s10 + $0x18] sm:$0xff]
    %v1863 = vld [vmem:[%s10 + $0x20] sm:$0xff]
    %v1864 = vld [vmem:[%s10 + $0x28] sm:$0xff]
    %v1865 = vld [vmem:[%s10 + $0x30] sm:$0xff]
    %v1866 = vld [vmem:[%s10 + $0x38] sm:$0xff]
    %v1867 = vld [vmem:[%s11] sm:$0xff]
    %v1868 = vld [vmem:[%s11 + $0x8] sm:$0xff]
    %v1869 = vld [vmem:[%s11 + $0x10] sm:$0xff]
    %v1870 = vld [vmem:[%s11 + $0x18] sm:$0xff]
    %v1871 = vld [vmem:[%s11 + $0x20] sm:$0xff]
    %v1872 = vld [vmem:[%s11 + $0x28] sm:$0xff]
    %v1873 = vld [vmem:[%s11 + $0x30] sm:$0xff]
    %v1874 = vld [vmem:[%s11 + $0x38] sm:$0xff]
    %v1875 = vld [vmem:[%s12] sm:$0xff]
    %v1876 = vld [vmem:[%s12 + $0x8] sm:$0xff]
    %v1877 = vld [vmem:[%s12 + $0x10] sm:$0xff]
    %v1878 = vld [vmem:[%s12 + $0x18] sm:$0xff]
    %v1879 = vld [vmem:[%s12 + $0x20] sm:$0xff]
    %v1880 = vld [vmem:[%s12 + $0x28] sm:$0xff]
    %v1881 = vld [vmem:[%s12 + $0x30] sm:$0xff]
    %v1882 = vld [vmem:[%s12 + $0x38] sm:$0xff]
    %v1883 = vrot.slane %v1857, 7
    %v1884 = vrot.slane %v1858, 7
    %v1885 = vsel %vm86, %v1883, %v1884
    %v1886 = vsel %vm86, %v1884, %v1883
    %v1887 = vsel %vm91, %v1886, 0.0
    %v1888 = vsel %vm92, %v1885, 0.0
    %v1889 = vrot.slane %v1857, 1
    %v1890 = vrot.slane %v1858, 1
    %v1891 = vsel %vm97, %v1889, %v1890
    %v1892 = vsel %vm97, %v1890, %v1889
    %v1893 = vsel %vm102, %v1891, 0.0
    %v1894 = vsel %vm103, %v1892, 0.0
    %v1896 = vsel %vm352, %v1887, 0
    %v1899 = vsel %vm352, %v1888, 0
    %1901 = vmatprep.subr.mxu0 0.0
    %1902 = vmatpush1.msra.mxu0 %v1867
    %1903 = vmatprep.subr.mxu0 0.0
    %1904 = vmatpush1.msra.mxu0 %v1868
    %1905 = vmatprep.subr.mxu0 0.0
    %1906 = vmatpush1.msra.mxu0 %v1869
    %1907 = vmatprep.subr.mxu0 0.0
    %1908 = vmatpush1.msra.mxu0 %v1870
    %1909 = vmatprep.subr.mxu0 0.0
    %1910 = vmatpush1.msra.mxu0 %v1871
    %1911 = vmatprep.subr.mxu0 0.0
    %1912 = vmatpush1.msra.mxu0 %v1872
    %1913 = vmatprep.subr.mxu0 0.0
    %1914 = vmatpush1.msra.mxu0 %v1873
    %1915 = vmatprep.subr.mxu0 0.0
    %1916 = vmatpush1.msra.mxu0 %v1874
    %1917 = vmatprep.subr.mxu0 0.0
    %1918 = vmatpush1.msra.mxu0 0.0
    %1919 = vmatprep.subr.mxu0 0.0
    %1920 = vmatpush1.msra.mxu0 0.0
    %1921 = vmatprep.subr.mxu0 0.0
    %1922 = vmatpush1.msra.mxu0 0.0
    %1923 = vmatprep.subr.mxu0 0.0
    %1924 = vmatpush1.msra.mxu0 0.0
    %1925 = vmatprep.subr.mxu0 0.0
    %1926 = vmatpush1.msra.mxu0 0.0
    %1927 = vmatprep.subr.mxu0 0.0
    %1928 = vmatpush1.msra.mxu0 0.0
    %1929 = vmatprep.subr.mxu0 0.0
    %1930 = vmatpush1.msra.mxu0 0.0
    %1931 = vmatprep.subr.mxu0 0.0
    %1932 = vmatpush1.msra.mxu0 0.0
    %1933 = vmatprep.subr.mxu0 0.0
    %1934 = vmatpush1.msra.mxu0 0.0
    %1935 = vmatprep.subr.mxu0 0.0
    %1936 = vmatpush1.msra.mxu0 0.0
    %1937 = vmatprep.subr.mxu0 0.0
    %1938 = vmatpush1.msra.mxu0 0.0
    %1939 = vmatprep.subr.mxu0 0.0
    %1940 = vmatpush1.msra.mxu0 0.0
    %1941 = vmatprep.subr.mxu0 0.0
    %1942 = vmatpush1.msra.mxu0 0.0
    %1943 = vmatprep.subr.mxu0 0.0
    %1944 = vmatpush1.msra.mxu0 0.0
    %1945 = vmatprep.subr.mxu0 0.0
    %1946 = vmatpush1.msra.mxu0 0.0
    %1947 = vmatprep.subr.mxu0 0.0
    %1948 = vmatpush1.msra.mxu0 0.0
    %1949 = vmatprep.subr.mxu0 0.0
    %1950 = vmatpush1.msra.mxu0 0.0
    %1951 = vmatprep.subr.mxu0 0.0
    %1952 = vmatpush1.msra.mxu0 0.0
    %1953 = vmatprep.subr.mxu0 0.0
    %1954 = vmatpush1.msra.mxu0 0.0
    %1955 = vmatprep.subr.mxu0 0.0
    %1956 = vmatpush1.msra.mxu0 0.0
    %1957 = vmatprep.subr.mxu0 0.0
    %1958 = vmatpush1.msra.mxu0 0.0
    %1959 = vmatprep.subr.mxu0 0.0
    %1960 = vmatpush1.msra.mxu0 0.0
    %1961 = vmatprep.subr.mxu0 0.0
    %1962 = vmatpush1.msra.mxu0 0.0
    %1963 = vmatprep.subr.mxu0 0.0
    %1964 = vmatpush1.msra.mxu0 0.0
    %1965 = vmatprep.mubr.f32.mxu0 0.0
    %1966 = vmatmul.mubr.f32.gmra.mrb[0].mxu0 %v1896
    %v1967 = vpop.f32.mrb[0].mxu0
    %v1968 = vadd.f32 0.0, %v1967
    %v1969 = vpop.f32.mrb[0].mxu0
    %1970 = vmatprep.mubr.f32.mxu0 0.0
    %1971 = vmatmul.mubr.f32.gmra.mrb[0].mxu0 %v1899
    %v1972 = vpop.f32.mrb[0].mxu0
    %v1973 = vadd.f32 0.0, %v1972
    %v1974 = vpop.f32.mrb[0].mxu0
    %1975 = vdwg.mxu0
    %v1977 = vsel %vm352, %v1857, 0
    %v1980 = vsel %vm352, %v1858, 0
    %1982 = vmatprep.subr.mxu0 0.0
    %1983 = vmatpush1.msra.mxu0 %v1859
    %1984 = vmatprep.subr.mxu0 0.0
    %1985 = vmatpush1.msra.mxu0 %v1860
    %1986 = vmatprep.subr.mxu0 0.0
    %1987 = vmatpush1.msra.mxu0 %v1861
    %1988 = vmatprep.subr.mxu0 0.0
    %1989 = vmatpush1.msra.mxu0 %v1862
    %1990 = vmatprep.subr.mxu0 0.0
    %1991 = vmatpush1.msra.mxu0 %v1863
    %1992 = vmatprep.subr.mxu0 0.0
    %1993 = vmatpush1.msra.mxu0 %v1864
    %1994 = vmatprep.subr.mxu0 0.0
    %1995 = vmatpush1.msra.mxu0 %v1865
    %1996 = vmatprep.subr.mxu0 0.0
    %1997 = vmatpush1.msra.mxu0 %v1866
    %1998 = vmatprep.subr.mxu0 0.0
    %1999 = vmatpush1.msra.mxu0 0.0
    %2000 = vmatprep.subr.mxu0 0.0
    %2001 = vmatpush1.msra.mxu0 0.0
    %2002 = vmatprep.subr.mxu0 0.0
    %2003 = vmatpush1.msra.mxu0 0.0
    %2004 = vmatprep.subr.mxu0 0.0
    %2005 = vmatpush1.msra.mxu0 0.0
    %2006 = vmatprep.subr.mxu0 0.0
    %2007 = vmatpush1.msra.mxu0 0.0
    %2008 = vmatprep.subr.mxu0 0.0
    %2009 = vmatpush1.msra.mxu0 0.0
    %2010 = vmatprep.subr.mxu0 0.0
    %2011 = vmatpush1.msra.mxu0 0.0
    %2012 = vmatprep.subr.mxu0 0.0
    %2013 = vmatpush1.msra.mxu0 0.0
    %2014 = vmatprep.subr.mxu0 0.0
    %2015 = vmatpush1.msra.mxu0 0.0
    %2016 = vmatprep.subr.mxu0 0.0
    %2017 = vmatpush1.msra.mxu0 0.0
    %2018 = vmatprep.subr.mxu0 0.0
    %2019 = vmatpush1.msra.mxu0 0.0
    %2020 = vmatprep.subr.mxu0 0.0
    %2021 = vmatpush1.msra.mxu0 0.0
    %2022 = vmatprep.subr.mxu0 0.0
    %2023 = vmatpush1.msra.mxu0 0.0
    %2024 = vmatprep.subr.mxu0 0.0
    %2025 = vmatpush1.msra.mxu0 0.0
    %2026 = vmatprep.subr.mxu0 0.0
    %2027 = vmatpush1.msra.mxu0 0.0
    %2028 = vmatprep.subr.mxu0 0.0
    %2029 = vmatpush1.msra.mxu0 0.0
    %2030 = vmatprep.subr.mxu0 0.0
    %2031 = vmatpush1.msra.mxu0 0.0
    %2032 = vmatprep.subr.mxu0 0.0
    %2033 = vmatpush1.msra.mxu0 0.0
    %2034 = vmatprep.subr.mxu0 0.0
    %2035 = vmatpush1.msra.mxu0 0.0
    %2036 = vmatprep.subr.mxu0 0.0
    %2037 = vmatpush1.msra.mxu0 0.0
    %2038 = vmatprep.subr.mxu0 0.0
    %2039 = vmatpush1.msra.mxu0 0.0
    %2040 = vmatprep.subr.mxu0 0.0
    %2041 = vmatpush1.msra.mxu0 0.0
    %2042 = vmatprep.subr.mxu0 0.0
    %2043 = vmatpush1.msra.mxu0 0.0
    %2044 = vmatprep.subr.mxu0 0.0
    %2045 = vmatpush1.msra.mxu0 0.0
    %2046 = vmatprep.mubr.f32.mxu0 0.0
    %2047 = vmatmul.mubr.f32.gmra.mrb[0].mxu0 %v1977
    %v2048 = vpop.f32.mrb[0].mxu0
    %v2049 = vadd.f32 %v1968, %v2048
    %v2050 = vpop.f32.mrb[0].mxu0
    %2051 = vmatprep.mubr.f32.mxu0 0.0
    %2052 = vmatmul.mubr.f32.gmra.mrb[0].mxu0 %v1980
    %v2053 = vpop.f32.mrb[0].mxu0
    %v2054 = vadd.f32 %v1973, %v2053
    %v2055 = vpop.f32.mrb[0].mxu0
    %2056 = vdwg.mxu0
    %v2058 = vsel %vm352, %v1893, 0
    %v2061 = vsel %vm352, %v1894, 0
    %2063 = vmatprep.subr.mxu0 0.0
    %2064 = vmatpush1.msra.mxu0 %v1875
    %2065 = vmatprep.subr.mxu0 0.0
    %2066 = vmatpush1.msra.mxu0 %v1876
    %2067 = vmatprep.subr.mxu0 0.0
    %2068 = vmatpush1.msra.mxu0 %v1877
    %2069 = vmatprep.subr.mxu0 0.0
    %2070 = vmatpush1.msra.mxu0 %v1878
    %2071 = vmatprep.subr.mxu0 0.0
    %2072 = vmatpush1.msra.mxu0 %v1879
    %2073 = vmatprep.subr.mxu0 0.0
    %2074 = vmatpush1.msra.mxu0 %v1880
    %2075 = vmatprep.subr.mxu0 0.0
    %2076 = vmatpush1.msra.mxu0 %v1881
    %2077 = vmatprep.subr.mxu0 0.0
    %2078 = vmatpush1.msra.mxu0 %v1882
    %2079 = vmatprep.subr.mxu0 0.0
    %2080 = vmatpush1.msra.mxu0 0.0
    %2081 = vmatprep.subr.mxu0 0.0
    %2082 = vmatpush1.msra.mxu0 0.0
    %2083 = vmatprep.subr.mxu0 0.0
    %2084 = vmatpush1.msra.mxu0 0.0
    %2085 = vmatprep.subr.mxu0 0.0
    %2086 = vmatpush1.msra.mxu0 0.0
    %2087 = vmatprep.subr.mxu0 0.0
    %2088 = vmatpush1.msra.mxu0 0.0
    %2089 = vmatprep.subr.mxu0 0.0
    %2090 = vmatpush1.msra.mxu0 0.0
    %2091 = vmatprep.subr.mxu0 0.0
    %2092 = vmatpush1.msra.mxu0 0.0
    %2093 = vmatprep.subr.mxu0 0.0
    %2094 = vmatpush1.msra.mxu0 0.0
    %2095 = vmatprep.subr.mxu0 0.0
    %2096 = vmatpush1.msra.mxu0 0.0
    %2097 = vmatprep.subr.mxu0 0.0
    %2098 = vmatpush1.msra.mxu0 0.0
    %2099 = vmatprep.subr.mxu0 0.0
    %2100 = vmatpush1.msra.mxu0 0.0
    %2101 = vmatprep.subr.mxu0 0.0
    %2102 = vmatpush1.msra.mxu0 0.0
    %2103 = vmatprep.subr.mxu0 0.0
    %2104 = vmatpush1.msra.mxu0 0.0
    %2105 = vmatprep.subr.mxu0 0.0
    %2106 = vmatpush1.msra.mxu0 0.0
    %2107 = vmatprep.subr.mxu0 0.0
    %2108 = vmatpush1.msra.mxu0 0.0
    %2109 = vmatprep.subr.mxu0 0.0
    %2110 = vmatpush1.msra.mxu0 0.0
    %2111 = vmatprep.subr.mxu0 0.0
    %2112 = vmatpush1.msra.mxu0 0.0
    %2113 = vmatprep.subr.mxu0 0.0
    %2114 = vmatpush1.msra.mxu0 0.0
    %2115 = vmatprep.subr.mxu0 0.0
    %2116 = vmatpush1.msra.mxu0 0.0
    %2117 = vmatprep.subr.mxu0 0.0
    %2118 = vmatpush1.msra.mxu0 0.0
    %2119 = vmatprep.subr.mxu0 0.0
    %2120 = vmatpush1.msra.mxu0 0.0
    %2121 = vmatprep.subr.mxu0 0.0
    %2122 = vmatpush1.msra.mxu0 0.0
    %2123 = vmatprep.subr.mxu0 0.0
    %2124 = vmatpush1.msra.mxu0 0.0
    %2125 = vmatprep.subr.mxu0 0.0
    %2126 = vmatpush1.msra.mxu0 0.0
    %2127 = vmatprep.mubr.f32.mxu0 0.0
    %2128 = vmatmul.mubr.f32.gmra.mrb[0].mxu0 %v2058
    %v2129 = vpop.f32.mrb[0].mxu0
    %v2130 = vadd.f32 0.0, %v2129
    %v2131 = vpop.f32.mrb[0].mxu0
    %2132 = vmatprep.mubr.f32.mxu0 0.0
    %2133 = vmatmul.mubr.f32.gmra.mrb[0].mxu0 %v2061
    %v2134 = vpop.f32.mrb[0].mxu0
    %v2135 = vadd.f32 0.0, %v2134
    %v2136 = vpop.f32.mrb[0].mxu0
    %2137 = vdwg.mxu0
    %v2138 = vadd.f32 %v2049, %v2130
    %v2139 = vadd.f32 %v2054, %v2135
    %v2140 = vsel %vm352, %v2138, 0.0
    %v2141 = vsel %vm352, %v2139, 0.0
    %v2142 = vadd.f32 %v2140, %v2141
    %v2143 = vrot.slane %v2142, 4
    %v2144 = vadd.f32 %v2142, %v2143
    %v2145 = vrot.slane %v2144, 2
    %v2146 = vadd.f32 %v2144, %v2145
    %v2147 = vrot.slane %v2146, 1
    %v2148 = vadd.f32 %v2146, %v2147
    %v2149 = vmul.f32 %v2138, %v2138
    %v2150 = vmul.f32 %v2139, %v2139
    %v2151 = vsel %vm352, %v2149, 0.0
    %v2152 = vsel %vm352, %v2150, 0.0
    %v2153 = vadd.f32 %v2151, %v2152
    %v2154 = vrot.slane %v2153, 4
    %v2155 = vadd.f32 %v2153, %v2154
    %v2156 = vrot.slane %v2155, 2
    %v2157 = vadd.f32 %v2155, %v2156
    %v2158 = vrot.slane %v2157, 1
    %v2159 = vadd.f32 %v2157, %v2158
    %v2160 = vrcp.pop 16.0
    %v2161 = vmul.f32 %v2148, %v2160
    %v2162 = vmul.f32 %v2159, %v2160
    %v2163 = vmul.f32 %v2161, %v2161
    %v2164 = vsub.f32 %v2162, %v2163
    %v2165 = vmax.f32 %v2164, 0.0
    %v2166 = vadd.f32 %v2165, 1e-05
    %v2167 = vrsqrt.pop %v2166
    %v2168 = vsub.f32 %v2138, %v2161
    %v2169 = vsub.f32 %v2139, %v2161
    %v2170 = vmul.f32 %v2168, %v2167
    %v2171 = vmul.f32 %v2169, %v2167
    %v2172 = vmax.f32 %v2170, 0.0
    %v2173 = vmax.f32 %v2171, 0.0
    %v2174 = vsel %vm352, %v2172, 0.0
    %v2175 = vrot.slane %v2174, 4
    %v2176 = vadd.f32 %v2174, %v2175
    %v2177 = vrot.slane %v2176, 2
    %v2178 = vadd.f32 %v2176, %v2177
    %v2179 = vrot.slane %v2178, 1
    %v2180 = vadd.f32 %v2178, %v2179
    %v2181 = vsel %vm352, %v2173, 0.0
    %v2182 = vrot.slane %v2181, 4
    %v2183 = vadd.f32 %v2181, %v2182
    %v2184 = vrot.slane %v2183, 2
    %v2185 = vadd.f32 %v2183, %v2184
    %v2186 = vrot.slane %v2185, 1
    %v2187 = vadd.f32 %v2185, %v2186
    %v2188 = vrcp.pop 8.0
    %v2189 = vmul.f32 %v2180, %v2188
    %v2190 = vmul.f32 %v2187, %v2188
    %v2191 = vmul.f32 %v2189, %v2189
    %v2192 = vmul.f32 %v2190, %v2190
    %vm2195 = vcmask 1041409
    %v2196 = vsel %vm2195, %v2192, %v2191
    %vm2198 = vcmask 517120
    %v2199 = vsel %vm2198, %v2196, 0.0
    %2200 = vadd.xlane.f32.xlu0 %v2199
    %v2201 = vpop.xlane.xlu0 %2200
    %v2202 = vmax.f32 %v2201, 1e-24
    %v2203 = vrsqrt.pop %v2202
    %v2205 = vrot.slane %v2203, 1
    %v2208 = vmul.f32 %v2189, %v2203
    %v2209 = vmul.f32 %v2190, %v2205
    %v2212 = vrot.slane %v2209, 7
    %v2213 = vsel %vm2195, %v2212, %v2208
    %2215 = vst.msk [vmem:[#allocation2] sm:$0x3] %vm2198, %v2213
    // Predicated region
    $region54: #{sim_conv4_forward.1} parent=1 // pred_check
      _
    $region55: #{sim_conv4_forward.1} parent=1 // pred_check_branch
      %2217 = sbr.rel (0) target = $region57
    $region56: #{sim_conv4_forward.1} parent=1 // pred_region
      %s2219 = ssub.s32 32, 32
      %2220 = vsyncadd [#allocation3], %s2219
      %s2222 = sshll.u32 [#allocation2], 4
      %s2223 = int_to_ptr.vmem [resolvable:$true] %s2222
      %2225 = dma.vmem_to_hbm [thread:$0]  %s2223, 32, %s13, [#allocation3]
    $region57: #{sim_conv4_forward.1} parent=1 // pred_fallthru
      _
    // Predicated region
    $region58: #{sim_conv4_forward.1} parent=1 // pred_check
      _
    $region59: #{sim_conv4_forward.1} parent=1 // pred_check_branch
      %2227 = sbr.rel (0) target = $region61
    $region60: #{sim_conv4_forward.1} parent=1 // pred_region
      %2228 = dma.done [#allocation3], 32
    $region61: #{sim_conv4_forward.1} parent=1 // pred_fallthru
      _
    %2229 = vsyncpa [#allocation3], 1

</llo_original>
